<compile_context>
chip_gen: v7x
topology: tpu7x:2x2x1
jax: 0.10.0
libtpu: 0.0.40
codegen_flags: <defaults>
</compile_context>

<pallas_src>
import functools

import jax
import jax.numpy as jnp
from jax.experimental import pallas as pl
from jax.experimental.pallas import tpu as pltpu


# ----------------------------- fused Pallas kernel -----------------------------

def _fused_mcc_kernel(emb_ref, mask_ref, eg_ref, eb_ref,
                      wqkv_ref, bqkv_ref, wo_ref, bo_ref,
                      ln1g_ref, ln1b_ref, w1_ref, b1_ref,
                      w2_ref, b2_ref, ln2g_ref, ln2b_ref,
                      pw_ref, pb_ref, cw_ref, cb_ref,
                      out_ref, *, num_layers, num_heads, head_dim, eps):
    f32 = jnp.float32
    H = num_heads * head_dim
    scale = 1.0 / (head_dim ** 0.5)

    def layernorm(v, g, b):
        mean = jnp.mean(v, axis=-1, keepdims=True)
        var = jnp.mean(jnp.square(v - mean), axis=-1, keepdims=True)
        return (v - mean) * jax.lax.rsqrt(var + eps) * g + b

    def gelu(v):
        # TODO(synk): reference KoBERT uses erf-GELU; tanh approximation differs ~1e-3.
        return 0.5 * v * (1.0 + jnp.tanh(0.7978845608028654 * (v + 0.044715 * v * v * v)))

    mask_bias = mask_ref[0].astype(f32)                                   # (1, S)
    # BERT embeddings LayerNorm on the precomputed word+pos+type sum.
    x = layernorm(emb_ref[0].astype(f32), eg_ref[...], eb_ref[...])       # (S, H)

    def layer_body(l, x):
        # fused QKV projection: (S, H) @ (H, 3H)
        qkv = jnp.dot(x, wqkv_ref[l], preferred_element_type=f32) + bqkv_ref[l]
        wo_l = wo_ref[l]                                                  # (H, H)

        # per-head attention; merge-heads + output projection are fused as
        # sum_h ctx_h @ wo[h*Dh:(h+1)*Dh, :]  (== concat(ctx_h) @ wo).
        attn_out = jnp.zeros_like(x)
        for h in range(num_heads):
            lo = h * head_dim
            q_h = qkv[:, lo:lo + head_dim]                                # (S, Dh)
            k_h = qkv[:, H + lo:H + lo + head_dim]
            v_h = qkv[:, 2 * H + lo:2 * H + lo + head_dim]
            s = jax.lax.dot_general(q_h, k_h, (((1,), (1,)), ((), ())),
                                    preferred_element_type=f32) * scale   # (S, S)
            s = s + mask_bias
            s = s - jnp.max(s, axis=-1, keepdims=True)
            p = jnp.exp(s)
            p = p * pl.reciprocal(jnp.sum(p, axis=-1, keepdims=True), approx=True)
            ctx_h = jnp.dot(p, v_h, preferred_element_type=f32)           # (S, Dh)
            attn_out = attn_out + jnp.dot(ctx_h, wo_l[lo:lo + head_dim, :],
                                          preferred_element_type=f32)
        attn_out = attn_out + bo_ref[l]

        x = layernorm(x + attn_out, ln1g_ref[l], ln1b_ref[l])

        hid = gelu(jnp.dot(x, w1_ref[l], preferred_element_type=f32) + b1_ref[l])
        ffn = jnp.dot(hid, w2_ref[l], preferred_element_type=f32) + b2_ref[l]
        return layernorm(x + ffn, ln2g_ref[l], ln2b_ref[l])

    x = jax.lax.fori_loop(0, num_layers, layer_body, x)

    # BERT pooler on [CLS] + classifier head (lane-dense 128-wide padded output).
    cls = x[0:1, :]                                                       # (1, H)
    pooled = jnp.tanh(jnp.dot(cls, pw_ref[...], preferred_element_type=f32)
                      + pb_ref[...])
    # nn.Dropout(p=dr_rate) on the pooler output is the identity in eval mode.
    # TODO(synk): training-mode stochastic dropout would use pltpu.prng_seed/prng_random_bits.
    logits = jnp.dot(pooled, cw_ref[...], preferred_element_type=f32) + cb_ref[...]
    out_ref[0] = logits.astype(out_ref.dtype)                             # (1, 128)


# ----------------------------- model definition -----------------------------

CFG = dict(vocab=100, hidden=32, layers=2, heads=2, ffn=64, max_pos=16,
           type_vocab=2, num_classes=5)


def init_params(seed, cfg):
    key = jax.random.PRNGKey(seed)
    keys = iter(jax.random.split(key, 32))
    H, F, L, NC = cfg["hidden"], cfg["ffn"], cfg["layers"], cfg["num_classes"]

    def nrm(shape):
        return 0.02 * jax.random.normal(next(keys), shape, jnp.float32)

    return {
        "word_emb": nrm((cfg["vocab"], H)),
        "pos_emb": nrm((cfg["max_pos"], H)),
        "type_emb": nrm((cfg["type_vocab"], H)),
        "emb_ln_g": jnp.ones((1, H), jnp.float32),
        "emb_ln_b": jnp.zeros((1, H), jnp.float32),
        # per-layer weights stacked on a leading L axis; wq|wk|wv fused to (H, 3H)
        "wqkv": nrm((L, H, 3 * H)),
        "bqkv": jnp.zeros((L, 1, 3 * H), jnp.float32),
        "wo": nrm((L, H, H)),
        "bo": jnp.zeros((L, 1, H), jnp.float32),
        "ln1_g": jnp.ones((L, 1, H), jnp.float32),
        "ln1_b": jnp.zeros((L, 1, H), jnp.float32),
        "w1": nrm((L, H, F)),
        "b1": jnp.zeros((L, 1, F), jnp.float32),
        "w2": nrm((L, F, H)),
        "b2": jnp.zeros((L, 1, H), jnp.float32),
        "ln2_g": jnp.ones((L, 1, H), jnp.float32),
        "ln2_b": jnp.zeros((L, 1, H), jnp.float32),
        "pool_w": nrm((H, H)),
        "pool_b": jnp.zeros((1, H), jnp.float32),
        "cls_w": nrm((H, NC)),                    # nn.Linear(hidden, num_classes)
        "cls_b": jnp.zeros((NC,), jnp.float32),
    }


def mcc_classifier_forward(params, token_ids, valid_length, segment_ids, *,
                           num_heads, dr_rate=None):
    B, S = token_ids.shape
    H = params["word_emb"].shape[1]
    L = params["wqkv"].shape[0]
    NC = params["cls_w"].shape[1]
    Dh = H // num_heads
    NPAD = 128  # lane-dense classifier output slab

    # generate_attention_mask: mask[b, :valid_length[b]] = 1; additive bias hoisted here.
    attn_mask = (jnp.arange(S)[None, :] < valid_length[:, None]).astype(jnp.float32)
    mask_bias = ((attn_mask - 1.0) * 10000.0).reshape(B, 1, S)

    # embedding gathers are plain-JAX glue; the fused kernel LayerNorms the sum.
    emb = (jnp.take(params["word_emb"], token_ids, axis=0)
           + jnp.take(params["type_emb"], segment_ids, axis=0)
           + params["pos_emb"][None, :S, :])                               # (B, S, H)

    # pad classifier weights to 128 output lanes (sliced back after the call).
    cls_w = jnp.zeros((H, NPAD), jnp.float32).at[:, :NC].set(params["cls_w"])
    cls_b = jnp.zeros((1, NPAD), jnp.float32).at[:, :NC].set(params["cls_b"][None, :])

    weights = (params["emb_ln_g"], params["emb_ln_b"],
               params["wqkv"], params["bqkv"], params["wo"], params["bo"],
               params["ln1_g"], params["ln1_b"], params["w1"], params["b1"],
               params["w2"], params["b2"], params["ln2_g"], params["ln2_b"],
               params["pool_w"], params["pool_b"], cls_w, cls_b)

    def full_spec(a):
        zeros = (0,) * a.ndim
        return pl.BlockSpec(a.shape, lambda b, z=zeros: z)

    kernel = functools.partial(_fused_mcc_kernel, num_layers=L,
                               num_heads=num_heads, head_dim=Dh, eps=1e-12)

    logits_pad = pl.pallas_call(
        kernel,
        out_shape=jax.ShapeDtypeStruct((B, 1, NPAD), jnp.float32),
        grid=(B,),
        in_specs=[pl.BlockSpec((1, S, H), lambda b: (b, 0, 0)),
                  pl.BlockSpec((1, 1, S), lambda b: (b, 0, 0))]
                 + [full_spec(w) for w in weights],
        out_specs=pl.BlockSpec((1, 1, NPAD), lambda b: (b, 0, 0)),
        compiler_params=pltpu.CompilerParams(dimension_semantics=("parallel",)),
    )(emb, mask_bias, *weights)

    # nn.Dropout(p=dr_rate) is the identity in eval/inference mode.
    return logits_pad[:, 0, :NC]


# ----------------------------- driver -----------------------------

if __name__ == "__main__":
    cfg = CFG
    B, S = 2, 8

    key = jax.random.PRNGKey(0)
    k_tok, _ = jax.random.split(key)
    token_ids = jax.random.randint(k_tok, (B, S), 0, cfg["vocab"], dtype=jnp.int32)
    segment_ids = jnp.zeros((B, S), jnp.int32)
    valid_length = jnp.array([5, 8], jnp.int32)

    params = init_params(42, cfg)

    forward = jax.jit(functools.partial(mcc_classifier_forward,
                                        num_heads=cfg["heads"]))
    logits = jax.block_until_ready(
        forward(params, token_ids, valid_length, segment_ids))

    assert logits.shape == (B, cfg["num_classes"])
    assert logits.dtype == jnp.float32
    print("KERNEL_OK")
</pallas_src>

<mosaic_0001>
module attributes {stable_mosaic.version = 11 : i64} {
  func.func @_fused_mcc_kernel(%arg0: i32, %arg1: memref<1x8x32xf32, #tpu.memory_space<vmem>>, %arg2: memref<1x1x8xf32, #tpu.memory_space<vmem>>, %arg3: memref<1x32xf32, #tpu.memory_space<vmem>>, %arg4: memref<1x32xf32, #tpu.memory_space<vmem>>, %arg5: memref<2x32x96xf32, #tpu.memory_space<vmem>>, %arg6: memref<2x1x96xf32, #tpu.memory_space<vmem>>, %arg7: memref<2x32x32xf32, #tpu.memory_space<vmem>>, %arg8: memref<2x1x32xf32, #tpu.memory_space<vmem>>, %arg9: memref<2x1x32xf32, #tpu.memory_space<vmem>>, %arg10: memref<2x1x32xf32, #tpu.memory_space<vmem>>, %arg11: memref<2x32x64xf32, #tpu.memory_space<vmem>>, %arg12: memref<2x1x64xf32, #tpu.memory_space<vmem>>, %arg13: memref<2x64x32xf32, #tpu.memory_space<vmem>>, %arg14: memref<2x1x32xf32, #tpu.memory_space<vmem>>, %arg15: memref<2x1x32xf32, #tpu.memory_space<vmem>>, %arg16: memref<2x1x32xf32, #tpu.memory_space<vmem>>, %arg17: memref<32x32xf32, #tpu.memory_space<vmem>>, %arg18: memref<1x32xf32, #tpu.memory_space<vmem>>, %arg19: memref<32x128xf32, #tpu.memory_space<vmem>>, %arg20: memref<1x128xf32, #tpu.memory_space<vmem>>, %arg21: memref<1x1x128xf32, #tpu.memory_space<vmem>>) attributes {dimension_semantics = [#tpu.dimension_semantics<parallel>], iteration_bounds = array<i64: 2>, scalar_prefetch = 0 : i64, scratch_operands = 0 : i64, tpu.core_type = #tpu.core_type<tc>, window_params = [{transform_indices = @transform_0, window_bounds = array<i64: 1, 8, 32>}, {transform_indices = @transform_1, window_bounds = array<i64: 1, 1, 8>}, {pipeline_mode = #tpu.pipeline_mode<synchronous>, transform_indices = @transform_2, window_bounds = array<i64: 1, 32>}, {pipeline_mode = #tpu.pipeline_mode<synchronous>, transform_indices = @transform_3, window_bounds = array<i64: 1, 32>}, {pipeline_mode = #tpu.pipeline_mode<synchronous>, transform_indices = @transform_4, window_bounds = array<i64: 2, 32, 96>}, {pipeline_mode = #tpu.pipeline_mode<synchronous>, transform_indices = @transform_5, window_bounds = array<i64: 2, 1, 96>}, {pipeline_mode = #tpu.pipeline_mode<synchronous>, transform_indices = @transform_6, window_bounds = array<i64: 2, 32, 32>}, {pipeline_mode = #tpu.pipeline_mode<synchronous>, transform_indices = @transform_7, window_bounds = array<i64: 2, 1, 32>}, {pipeline_mode = #tpu.pipeline_mode<synchronous>, transform_indices = @transform_8, window_bounds = array<i64: 2, 1, 32>}, {pipeline_mode = #tpu.pipeline_mode<synchronous>, transform_indices = @transform_9, window_bounds = array<i64: 2, 1, 32>}, {pipeline_mode = #tpu.pipeline_mode<synchronous>, transform_indices = @transform_10, window_bounds = array<i64: 2, 32, 64>}, {pipeline_mode = #tpu.pipeline_mode<synchronous>, transform_indices = @transform_11, window_bounds = array<i64: 2, 1, 64>}, {pipeline_mode = #tpu.pipeline_mode<synchronous>, transform_indices = @transform_12, window_bounds = array<i64: 2, 64, 32>}, {pipeline_mode = #tpu.pipeline_mode<synchronous>, transform_indices = @transform_13, window_bounds = array<i64: 2, 1, 32>}, {pipeline_mode = #tpu.pipeline_mode<synchronous>, transform_indices = @transform_14, window_bounds = array<i64: 2, 1, 32>}, {pipeline_mode = #tpu.pipeline_mode<synchronous>, transform_indices = @transform_15, window_bounds = array<i64: 2, 1, 32>}, {pipeline_mode = #tpu.pipeline_mode<synchronous>, transform_indices = @transform_16, window_bounds = array<i64: 32, 32>}, {pipeline_mode = #tpu.pipeline_mode<synchronous>, transform_indices = @transform_17, window_bounds = array<i64: 1, 32>}, {pipeline_mode = #tpu.pipeline_mode<synchronous>, transform_indices = @transform_18, window_bounds = array<i64: 32, 128>}, {pipeline_mode = #tpu.pipeline_mode<synchronous>, transform_indices = @transform_19, window_bounds = array<i64: 1, 128>}, {transform_indices = @transform_20, window_bounds = array<i64: 1, 1, 128>}]} {
    %c0 = arith.constant 0 : index
    %c0_0 = arith.constant 0 : index
    %c0_1 = arith.constant 0 : index
    %0 = vector.load %arg2[%c0, %c0_0, %c0_1] : memref<1x1x8xf32, #tpu.memory_space<vmem>>, vector<1x1x8xf32>
    %1 = vector.shape_cast %0 : vector<1x1x8xf32> to vector<1x8xf32>
    %c0_2 = arith.constant 0 : index
    %c0_3 = arith.constant 0 : index
    %c0_4 = arith.constant 0 : index
    %2 = vector.load %arg1[%c0_2, %c0_3, %c0_4] : memref<1x8x32xf32, #tpu.memory_space<vmem>>, vector<1x8x32xf32>
    %3 = vector.shape_cast %2 : vector<1x8x32xf32> to vector<8x32xf32>
    %c0_5 = arith.constant 0 : index
    %c0_6 = arith.constant 0 : index
    %4 = vector.load %arg3[%c0_5, %c0_6] : memref<1x32xf32, #tpu.memory_space<vmem>>, vector<1x32xf32>
    %c0_7 = arith.constant 0 : index
    %c0_8 = arith.constant 0 : index
    %5 = vector.load %arg4[%c0_7, %c0_8] : memref<1x32xf32, #tpu.memory_space<vmem>>, vector<1x32xf32>
    %cst = arith.constant dense<0.000000e+00> : vector<8xf32>
    %6 = vector.multi_reduction <add>, %3, %cst [1] : vector<8x32xf32> to vector<8xf32>
    %7 = vector.shape_cast %6 : vector<8xf32> to vector<8x1xf32>
    %cst_9 = arith.constant 3.200000e+01 : f32
    %8 = vector.broadcast %cst_9 : f32 to vector<8x1xf32>
    %9 = arith.divf %7, %8 : vector<8x1xf32>
    %10 = vector.broadcast %9 : vector<8x1xf32> to vector<8x32xf32>
    %11 = arith.subf %3, %10 : vector<8x32xf32>
    %12 = arith.mulf %11, %11 : vector<8x32xf32>
    %cst_10 = arith.constant dense<0.000000e+00> : vector<8xf32>
    %13 = vector.multi_reduction <add>, %12, %cst_10 [1] : vector<8x32xf32> to vector<8xf32>
    %14 = vector.shape_cast %13 : vector<8xf32> to vector<8x1xf32>
    %cst_11 = arith.constant 3.200000e+01 : f32
    %15 = vector.broadcast %cst_11 : f32 to vector<8x1xf32>
    %16 = arith.divf %14, %15 : vector<8x1xf32>
    %17 = vector.broadcast %9 : vector<8x1xf32> to vector<8x32xf32>
    %18 = arith.subf %3, %17 : vector<8x32xf32>
    %cst_12 = arith.constant 9.99999996E-13 : f32
    %19 = vector.broadcast %cst_12 : f32 to vector<8x1xf32>
    %20 = arith.addf %16, %19 : vector<8x1xf32>
    %21 = math.rsqrt %20 : vector<8x1xf32>
    %22 = vector.broadcast %21 : vector<8x1xf32> to vector<8x32xf32>
    %23 = arith.mulf %18, %22 : vector<8x32xf32>
    %24 = vector.broadcast %4 : vector<1x32xf32> to vector<8x32xf32>
    %25 = arith.mulf %23, %24 : vector<8x32xf32>
    %26 = vector.broadcast %5 : vector<1x32xf32> to vector<8x32xf32>
    %27 = arith.addf %25, %26 : vector<8x32xf32>
    %c0_i32 = arith.constant 0 : i32
    %c2_i32 = arith.constant 2 : i32
    %28 = arith.addi %c0_i32, %c2_i32 : i32
    %c1_i32 = arith.constant 1 : i32
    %29 = scf.for %arg22 = %c0_i32 to %28 step %c1_i32 iter_args(%arg23 = %27) -> (vector<8x32xf32>)  : i32 {
      %43 = arith.index_cast %arg22 : i32 to index
      %c0_27 = arith.constant 0 : index
      %c0_28 = arith.constant 0 : index
      %44 = vector.load %arg5[%43, %c0_27, %c0_28] : memref<2x32x96xf32, #tpu.memory_space<vmem>>, vector<1x32x96xf32>
      %45 = vector.shape_cast %44 : vector<1x32x96xf32> to vector<32x96xf32>
      %cst_29 = arith.constant dense<0.000000e+00> : vector<8x96xf32>
      %46 = tpu.matmul %arg23, %45, %cst_29 {dimension_numbers = #tpu.dot_dimension_numbers<[1], [0], [0], [1], [0, 0, 1, 1], [], []>} : vector<8x32xf32>, vector<32x96xf32>, vector<8x96xf32> -> vector<8x96xf32>
      %47 = arith.index_cast %arg22 : i32 to index
      %c0_30 = arith.constant 0 : index
      %c0_31 = arith.constant 0 : index
      %48 = vector.load %arg6[%47, %c0_30, %c0_31] : memref<2x1x96xf32, #tpu.memory_space<vmem>>, vector<1x1x96xf32>
      %49 = vector.shape_cast %48 : vector<1x1x96xf32> to vector<1x96xf32>
      %50 = vector.broadcast %49 : vector<1x96xf32> to vector<8x96xf32>
      %51 = arith.addf %46, %50 : vector<8x96xf32>
      %52 = arith.index_cast %arg22 : i32 to index
      %c0_32 = arith.constant 0 : index
      %c0_33 = arith.constant 0 : index
      %53 = vector.load %arg7[%52, %c0_32, %c0_33] : memref<2x32x32xf32, #tpu.memory_space<vmem>>, vector<1x32x32xf32>
      %54 = vector.shape_cast %53 : vector<1x32x32xf32> to vector<32x32xf32>
      %cst_34 = arith.constant 0.000000e+00 : f32
      %55 = vector.broadcast %cst_34 : f32 to vector<8x32xf32>
      %56 = vector.extract_strided_slice %51 {offsets = [0, 0], sizes = [8, 16], strides = [1, 1]} : vector<8x96xf32> to vector<8x16xf32>
      %57 = vector.extract_strided_slice %51 {offsets = [0, 32], sizes = [8, 16], strides = [1, 1]} : vector<8x96xf32> to vector<8x16xf32>
      %58 = vector.extract_strided_slice %51 {offsets = [0, 64], sizes = [8, 16], strides = [1, 1]} : vector<8x96xf32> to vector<8x16xf32>
      %cst_35 = arith.constant dense<0.000000e+00> : vector<8x8xf32>
      %59 = tpu.matmul %56, %57, %cst_35 {dimension_numbers = #tpu.dot_dimension_numbers<[1], [1], [0], [0], [0, 0, 1, 0], [], []>} : vector<8x16xf32>, vector<8x16xf32>, vector<8x8xf32> -> vector<8x8xf32>
      %cst_36 = arith.constant 2.500000e-01 : f32
      %60 = vector.broadcast %cst_36 : f32 to vector<8x8xf32>
      %61 = arith.mulf %59, %60 : vector<8x8xf32>
      %62 = vector.broadcast %1 : vector<1x8xf32> to vector<8x8xf32>
      %63 = arith.addf %61, %62 : vector<8x8xf32>
      %cst_37 = arith.constant dense<0xFF800000> : vector<8xf32>
      %64 = vector.multi_reduction <maximumf>, %63, %cst_37 [1] : vector<8x8xf32> to vector<8xf32>
      %65 = vector.shape_cast %64 : vector<8xf32> to vector<8x1xf32>
      %66 = vector.broadcast %65 : vector<8x1xf32> to vector<8x8xf32>
      %67 = arith.subf %63, %66 : vector<8x8xf32>
      %68 = math.exp %67 : vector<8x8xf32>
      %cst_38 = arith.constant dense<0.000000e+00> : vector<8xf32>
      %69 = vector.multi_reduction <add>, %68, %cst_38 [1] : vector<8x8xf32> to vector<8xf32>
      %70 = vector.shape_cast %69 : vector<8xf32> to vector<8x1xf32>
      %71 = tpu.reciprocal %70 {approx = true} : vector<8x1xf32> -> vector<8x1xf32>
      %72 = vector.broadcast %71 : vector<8x1xf32> to vector<8x8xf32>
      %73 = arith.mulf %68, %72 : vector<8x8xf32>
      %cst_39 = arith.constant dense<0.000000e+00> : vector<8x16xf32>
      %74 = tpu.matmul %73, %58, %cst_39 {dimension_numbers = #tpu.dot_dimension_numbers<[1], [0], [0], [1], [0, 0, 1, 1], [], []>} : vector<8x8xf32>, vector<8x16xf32>, vector<8x16xf32> -> vector<8x16xf32>
      %75 = vector.extract_strided_slice %54 {offsets = [0, 0], sizes = [16, 32], strides = [1, 1]} : vector<32x32xf32> to vector<16x32xf32>
      %cst_40 = arith.constant dense<0.000000e+00> : vector<8x32xf32>
      %76 = tpu.matmul %74, %75, %cst_40 {dimension_numbers = #tpu.dot_dimension_numbers<[1], [0], [0], [1], [0, 0, 1, 1], [], []>} : vector<8x16xf32>, vector<16x32xf32>, vector<8x32xf32> -> vector<8x32xf32>
      %77 = arith.addf %55, %76 : vector<8x32xf32>
      %78 = vector.extract_strided_slice %51 {offsets = [0, 16], sizes = [8, 16], strides = [1, 1]} : vector<8x96xf32> to vector<8x16xf32>
      %79 = vector.extract_strided_slice %51 {offsets = [0, 48], sizes = [8, 16], strides = [1, 1]} : vector<8x96xf32> to vector<8x16xf32>
      %80 = vector.extract_strided_slice %51 {offsets = [0, 80], sizes = [8, 16], strides = [1, 1]} : vector<8x96xf32> to vector<8x16xf32>
      %cst_41 = arith.constant dense<0.000000e+00> : vector<8x8xf32>
      %81 = tpu.matmul %78, %79, %cst_41 {dimension_numbers = #tpu.dot_dimension_numbers<[1], [1], [0], [0], [0, 0, 1, 0], [], []>} : vector<8x16xf32>, vector<8x16xf32>, vector<8x8xf32> -> vector<8x8xf32>
      %cst_42 = arith.constant 2.500000e-01 : f32
      %82 = vector.broadcast %cst_42 : f32 to vector<8x8xf32>
      %83 = arith.mulf %81, %82 : vector<8x8xf32>
      %84 = vector.broadcast %1 : vector<1x8xf32> to vector<8x8xf32>
      %85 = arith.addf %83, %84 : vector<8x8xf32>
      %cst_43 = arith.constant dense<0xFF800000> : vector<8xf32>
      %86 = vector.multi_reduction <maximumf>, %85, %cst_43 [1] : vector<8x8xf32> to vector<8xf32>
      %87 = vector.shape_cast %86 : vector<8xf32> to vector<8x1xf32>
      %88 = vector.broadcast %87 : vector<8x1xf32> to vector<8x8xf32>
      %89 = arith.subf %85, %88 : vector<8x8xf32>
      %90 = math.exp %89 : vector<8x8xf32>
      %cst_44 = arith.constant dense<0.000000e+00> : vector<8xf32>
      %91 = vector.multi_reduction <add>, %90, %cst_44 [1] : vector<8x8xf32> to vector<8xf32>
      %92 = vector.shape_cast %91 : vector<8xf32> to vector<8x1xf32>
      %93 = tpu.reciprocal %92 {approx = true} : vector<8x1xf32> -> vector<8x1xf32>
      %94 = vector.broadcast %93 : vector<8x1xf32> to vector<8x8xf32>
      %95 = arith.mulf %90, %94 : vector<8x8xf32>
      %cst_45 = arith.constant dense<0.000000e+00> : vector<8x16xf32>
      %96 = tpu.matmul %95, %80, %cst_45 {dimension_numbers = #tpu.dot_dimension_numbers<[1], [0], [0], [1], [0, 0, 1, 1], [], []>} : vector<8x8xf32>, vector<8x16xf32>, vector<8x16xf32> -> vector<8x16xf32>
      %97 = vector.extract_strided_slice %54 {offsets = [16, 0], sizes = [16, 32], strides = [1, 1]} : vector<32x32xf32> to vector<16x32xf32>
      %cst_46 = arith.constant dense<0.000000e+00> : vector<8x32xf32>
      %98 = tpu.matmul %96, %97, %cst_46 {dimension_numbers = #tpu.dot_dimension_numbers<[1], [0], [0], [1], [0, 0, 1, 1], [], []>} : vector<8x16xf32>, vector<16x32xf32>, vector<8x32xf32> -> vector<8x32xf32>
      %99 = arith.addf %77, %98 : vector<8x32xf32>
      %100 = arith.index_cast %arg22 : i32 to index
      %c0_47 = arith.constant 0 : index
      %c0_48 = arith.constant 0 : index
      %101 = vector.load %arg8[%100, %c0_47, %c0_48] : memref<2x1x32xf32, #tpu.memory_space<vmem>>, vector<1x1x32xf32>
      %102 = vector.shape_cast %101 : vector<1x1x32xf32> to vector<1x32xf32>
      %103 = vector.broadcast %102 : vector<1x32xf32> to vector<8x32xf32>
      %104 = arith.addf %99, %103 : vector<8x32xf32>
      %105 = arith.addf %arg23, %104 : vector<8x32xf32>
      %106 = arith.index_cast %arg22 : i32 to index
      %c0_49 = arith.constant 0 : index
      %c0_50 = arith.constant 0 : index
      %107 = vector.load %arg9[%106, %c0_49, %c0_50] : memref<2x1x32xf32, #tpu.memory_space<vmem>>, vector<1x1x32xf32>
      %108 = vector.shape_cast %107 : vector<1x1x32xf32> to vector<1x32xf32>
      %109 = arith.index_cast %arg22 : i32 to index
      %c0_51 = arith.constant 0 : index
      %c0_52 = arith.constant 0 : index
      %110 = vector.load %arg10[%109, %c0_51, %c0_52] : memref<2x1x32xf32, #tpu.memory_space<vmem>>, vector<1x1x32xf32>
      %111 = vector.shape_cast %110 : vector<1x1x32xf32> to vector<1x32xf32>
      %cst_53 = arith.constant dense<0.000000e+00> : vector<8xf32>
      %112 = vector.multi_reduction <add>, %105, %cst_53 [1] : vector<8x32xf32> to vector<8xf32>
      %113 = vector.shape_cast %112 : vector<8xf32> to vector<8x1xf32>
      %cst_54 = arith.constant 3.200000e+01 : f32
      %114 = vector.broadcast %cst_54 : f32 to vector<8x1xf32>
      %115 = arith.divf %113, %114 : vector<8x1xf32>
      %116 = vector.broadcast %115 : vector<8x1xf32> to vector<8x32xf32>
      %117 = arith.subf %105, %116 : vector<8x32xf32>
      %118 = arith.mulf %117, %117 : vector<8x32xf32>
      %cst_55 = arith.constant dense<0.000000e+00> : vector<8xf32>
      %119 = vector.multi_reduction <add>, %118, %cst_55 [1] : vector<8x32xf32> to vector<8xf32>
      %120 = vector.shape_cast %119 : vector<8xf32> to vector<8x1xf32>
      %cst_56 = arith.constant 3.200000e+01 : f32
      %121 = vector.broadcast %cst_56 : f32 to vector<8x1xf32>
      %122 = arith.divf %120, %121 : vector<8x1xf32>
      %123 = vector.broadcast %115 : vector<8x1xf32> to vector<8x32xf32>
      %124 = arith.subf %105, %123 : vector<8x32xf32>
      %cst_57 = arith.constant 9.99999996E-13 : f32
      %125 = vector.broadcast %cst_57 : f32 to vector<8x1xf32>
      %126 = arith.addf %122, %125 : vector<8x1xf32>
      %127 = math.rsqrt %126 : vector<8x1xf32>
      %128 = vector.broadcast %127 : vector<8x1xf32> to vector<8x32xf32>
      %129 = arith.mulf %124, %128 : vector<8x32xf32>
      %130 = vector.broadcast %108 : vector<1x32xf32> to vector<8x32xf32>
      %131 = arith.mulf %129, %130 : vector<8x32xf32>
      %132 = vector.broadcast %111 : vector<1x32xf32> to vector<8x32xf32>
      %133 = arith.addf %131, %132 : vector<8x32xf32>
      %134 = arith.index_cast %arg22 : i32 to index
      %c0_58 = arith.constant 0 : index
      %c0_59 = arith.constant 0 : index
      %135 = vector.load %arg11[%134, %c0_58, %c0_59] : memref<2x32x64xf32, #tpu.memory_space<vmem>>, vector<1x32x64xf32>
      %136 = vector.shape_cast %135 : vector<1x32x64xf32> to vector<32x64xf32>
      %cst_60 = arith.constant dense<0.000000e+00> : vector<8x64xf32>
      %137 = tpu.matmul %133, %136, %cst_60 {dimension_numbers = #tpu.dot_dimension_numbers<[1], [0], [0], [1], [0, 0, 1, 1], [], []>} : vector<8x32xf32>, vector<32x64xf32>, vector<8x64xf32> -> vector<8x64xf32>
      %138 = arith.index_cast %arg22 : i32 to index
      %c0_61 = arith.constant 0 : index
      %c0_62 = arith.constant 0 : index
      %139 = vector.load %arg12[%138, %c0_61, %c0_62] : memref<2x1x64xf32, #tpu.memory_space<vmem>>, vector<1x1x64xf32>
      %140 = vector.shape_cast %139 : vector<1x1x64xf32> to vector<1x64xf32>
      %141 = vector.broadcast %140 : vector<1x64xf32> to vector<8x64xf32>
      %142 = arith.addf %137, %141 : vector<8x64xf32>
      %cst_63 = arith.constant 5.000000e-01 : f32
      %143 = vector.broadcast %cst_63 : f32 to vector<8x64xf32>
      %144 = arith.mulf %143, %142 : vector<8x64xf32>
      %cst_64 = arith.constant 4.471500e-02 : f32
      %145 = vector.broadcast %cst_64 : f32 to vector<8x64xf32>
      %146 = arith.mulf %145, %142 : vector<8x64xf32>
      %147 = arith.mulf %146, %142 : vector<8x64xf32>
      %148 = arith.mulf %147, %142 : vector<8x64xf32>
      %149 = arith.addf %142, %148 : vector<8x64xf32>
      %cst_65 = arith.constant 0.797884583 : f32
      %150 = vector.broadcast %cst_65 : f32 to vector<8x64xf32>
      %151 = arith.mulf %150, %149 : vector<8x64xf32>
      %152 = math.tanh %151 : vector<8x64xf32>
      %cst_66 = arith.constant 1.000000e+00 : f32
      %153 = vector.broadcast %cst_66 : f32 to vector<8x64xf32>
      %154 = arith.addf %153, %152 : vector<8x64xf32>
      %155 = arith.mulf %144, %154 : vector<8x64xf32>
      %156 = arith.index_cast %arg22 : i32 to index
      %c0_67 = arith.constant 0 : index
      %c0_68 = arith.constant 0 : index
      %157 = vector.load %arg13[%156, %c0_67, %c0_68] : memref<2x64x32xf32, #tpu.memory_space<vmem>>, vector<1x64x32xf32>
      %158 = vector.shape_cast %157 : vector<1x64x32xf32> to vector<64x32xf32>
      %cst_69 = arith.constant dense<0.000000e+00> : vector<8x32xf32>
      %159 = tpu.matmul %155, %158, %cst_69 {dimension_numbers = #tpu.dot_dimension_numbers<[1], [0], [0], [1], [0, 0, 1, 1], [], []>} : vector<8x64xf32>, vector<64x32xf32>, vector<8x32xf32> -> vector<8x32xf32>
      %160 = arith.index_cast %arg22 : i32 to index
      %c0_70 = arith.constant 0 : index
      %c0_71 = arith.constant 0 : index
      %161 = vector.load %arg14[%160, %c0_70, %c0_71] : memref<2x1x32xf32, #tpu.memory_space<vmem>>, vector<1x1x32xf32>
      %162 = vector.shape_cast %161 : vector<1x1x32xf32> to vector<1x32xf32>
      %163 = vector.broadcast %162 : vector<1x32xf32> to vector<8x32xf32>
      %164 = arith.addf %159, %163 : vector<8x32xf32>
      %165 = arith.addf %133, %164 : vector<8x32xf32>
      %166 = arith.index_cast %arg22 : i32 to index
      %c0_72 = arith.constant 0 : index
      %c0_73 = arith.constant 0 : index
      %167 = vector.load %arg15[%166, %c0_72, %c0_73] : memref<2x1x32xf32, #tpu.memory_space<vmem>>, vector<1x1x32xf32>
      %168 = vector.shape_cast %167 : vector<1x1x32xf32> to vector<1x32xf32>
      %169 = arith.index_cast %arg22 : i32 to index
      %c0_74 = arith.constant 0 : index
      %c0_75 = arith.constant 0 : index
      %170 = vector.load %arg16[%169, %c0_74, %c0_75] : memref<2x1x32xf32, #tpu.memory_space<vmem>>, vector<1x1x32xf32>
      %171 = vector.shape_cast %170 : vector<1x1x32xf32> to vector<1x32xf32>
      %cst_76 = arith.constant dense<0.000000e+00> : vector<8xf32>
      %172 = vector.multi_reduction <add>, %165, %cst_76 [1] : vector<8x32xf32> to vector<8xf32>
      %173 = vector.shape_cast %172 : vector<8xf32> to vector<8x1xf32>
      %cst_77 = arith.constant 3.200000e+01 : f32
      %174 = vector.broadcast %cst_77 : f32 to vector<8x1xf32>
      %175 = arith.divf %173, %174 : vector<8x1xf32>
      %176 = vector.broadcast %175 : vector<8x1xf32> to vector<8x32xf32>
      %177 = arith.subf %165, %176 : vector<8x32xf32>
      %178 = arith.mulf %177, %177 : vector<8x32xf32>
      %cst_78 = arith.constant dense<0.000000e+00> : vector<8xf32>
      %179 = vector.multi_reduction <add>, %178, %cst_78 [1] : vector<8x32xf32> to vector<8xf32>
      %180 = vector.shape_cast %179 : vector<8xf32> to vector<8x1xf32>
      %cst_79 = arith.constant 3.200000e+01 : f32
      %181 = vector.broadcast %cst_79 : f32 to vector<8x1xf32>
      %182 = arith.divf %180, %181 : vector<8x1xf32>
      %183 = vector.broadcast %175 : vector<8x1xf32> to vector<8x32xf32>
      %184 = arith.subf %165, %183 : vector<8x32xf32>
      %cst_80 = arith.constant 9.99999996E-13 : f32
      %185 = vector.broadcast %cst_80 : f32 to vector<8x1xf32>
      %186 = arith.addf %182, %185 : vector<8x1xf32>
      %187 = math.rsqrt %186 : vector<8x1xf32>
      %188 = vector.broadcast %187 : vector<8x1xf32> to vector<8x32xf32>
      %189 = arith.mulf %184, %188 : vector<8x32xf32>
      %190 = vector.broadcast %168 : vector<1x32xf32> to vector<8x32xf32>
      %191 = arith.mulf %189, %190 : vector<8x32xf32>
      %192 = vector.broadcast %171 : vector<1x32xf32> to vector<8x32xf32>
      %193 = arith.addf %191, %192 : vector<8x32xf32>
      scf.yield %193 : vector<8x32xf32>
    }
    %c2_i32_13 = arith.constant 2 : i32
    %30 = vector.extract_strided_slice %29 {offsets = [0, 0], sizes = [1, 32], strides = [1, 1]} : vector<8x32xf32> to vector<1x32xf32>
    %c0_14 = arith.constant 0 : index
    %c0_15 = arith.constant 0 : index
    %31 = vector.load %arg17[%c0_14, %c0_15] : memref<32x32xf32, #tpu.memory_space<vmem>>, vector<32x32xf32>
    %cst_16 = arith.constant dense<0.000000e+00> : vector<1x32xf32>
    %32 = tpu.matmul %30, %31, %cst_16 {dimension_numbers = #tpu.dot_dimension_numbers<[1], [0], [0], [1], [0, 0, 1, 1], [], []>} : vector<1x32xf32>, vector<32x32xf32>, vector<1x32xf32> -> vector<1x32xf32>
    %c0_17 = arith.constant 0 : index
    %c0_18 = arith.constant 0 : index
    %33 = vector.load %arg18[%c0_17, %c0_18] : memref<1x32xf32, #tpu.memory_space<vmem>>, vector<1x32xf32>
    %34 = arith.addf %32, %33 : vector<1x32xf32>
    %35 = math.tanh %34 : vector<1x32xf32>
    %c0_19 = arith.constant 0 : index
    %c0_20 = arith.constant 0 : index
    %36 = vector.load %arg19[%c0_19, %c0_20] : memref<32x128xf32, #tpu.memory_space<vmem>>, vector<32x128xf32>
    %cst_21 = arith.constant dense<0.000000e+00> : vector<1x128xf32>
    %37 = tpu.matmul %35, %36, %cst_21 {dimension_numbers = #tpu.dot_dimension_numbers<[1], [0], [0], [1], [0, 0, 1, 1], [], []>} : vector<1x32xf32>, vector<32x128xf32>, vector<1x128xf32> -> vector<1x128xf32>
    %c0_22 = arith.constant 0 : index
    %c0_23 = arith.constant 0 : index
    %38 = vector.load %arg20[%c0_22, %c0_23] : memref<1x128xf32, #tpu.memory_space<vmem>>, vector<1x128xf32>
    %39 = arith.addf %37, %38 : vector<1x128xf32>
    %c0_24 = arith.constant 0 : index
    %c0_25 = arith.constant 0 : index
    %c0_26 = arith.constant 0 : index
    %40 = vector.load %arg21[%c0_24, %c0_25, %c0_26] : memref<1x1x128xf32, #tpu.memory_space<vmem>>, vector<1x1x128xf32>
    %41 = vector.shape_cast %40 : vector<1x1x128xf32> to vector<1x128xf32>
    %42 = vector.shape_cast %39 : vector<1x128xf32> to vector<1x1x128xf32>
    tpu.vector_store %arg21[%c0_24, %c0_25, %c0_26], %42 {strides = array<i32>} : memref<1x1x128xf32, #tpu.memory_space<vmem>>, vector<1x1x128xf32>,
    return
  }
  func.func @transform_0(%arg0: i32) -> (i32, i32, i32) {
    %c0_i32 = arith.constant 0 : i32
    %c0_i32_0 = arith.constant 0 : i32
    %c0_i32_1 = arith.constant 0 : i32
    return %arg0, %c0_i32, %c0_i32_0 : i32, i32, i32
  }
  func.func @transform_1(%arg0: i32) -> (i32, i32, i32) {
    %c0_i32 = arith.constant 0 : i32
    %c0_i32_0 = arith.constant 0 : i32
    %c0_i32_1 = arith.constant 0 : i32
    return %arg0, %c0_i32, %c0_i32_0 : i32, i32, i32
  }
  func.func @transform_2(%arg0: i32) -> (i32, i32) {
    %c0_i32 = arith.constant 0 : i32
    %c0_i32_0 = arith.constant 0 : i32
    %c0_i32_1 = arith.constant 0 : i32
    return %c0_i32, %c0_i32_0 : i32, i32
  }
  func.func @transform_3(%arg0: i32) -> (i32, i32) {
    %c0_i32 = arith.constant 0 : i32
    %c0_i32_0 = arith.constant 0 : i32
    %c0_i32_1 = arith.constant 0 : i32
    return %c0_i32, %c0_i32_0 : i32, i32
  }
  func.func @transform_4(%arg0: i32) -> (i32, i32, i32) {
    %c0_i32 = arith.constant 0 : i32
    %c0_i32_0 = arith.constant 0 : i32
    %c0_i32_1 = arith.constant 0 : i32
    %c0_i32_2 = arith.constant 0 : i32
    return %c0_i32, %c0_i32_0, %c0_i32_1 : i32, i32, i32
  }
  func.func @transform_5(%arg0: i32) -> (i32, i32, i32) {
    %c0_i32 = arith.constant 0 : i32
    %c0_i32_0 = arith.constant 0 : i32
    %c0_i32_1 = arith.constant 0 : i32
    %c0_i32_2 = arith.constant 0 : i32
    return %c0_i32, %c0_i32_0, %c0_i32_1 : i32, i32, i32
  }
  func.func @transform_6(%arg0: i32) -> (i32, i32, i32) {
    %c0_i32 = arith.constant 0 : i32
    %c0_i32_0 = arith.constant 0 : i32
    %c0_i32_1 = arith.constant 0 : i32
    %c0_i32_2 = arith.constant 0 : i32
    return %c0_i32, %c0_i32_0, %c0_i32_1 : i32, i32, i32
  }
  func.func @transform_7(%arg0: i32) -> (i32, i32, i32) {
    %c0_i32 = arith.constant 0 : i32
    %c0_i32_0 = arith.constant 0 : i32
    %c0_i32_1 = arith.constant 0 : i32
    %c0_i32_2 = arith.constant 0 : i32
    return %c0_i32, %c0_i32_0, %c0_i32_1 : i32, i32, i32
  }
  func.func @transform_8(%arg0: i32) -> (i32, i32, i32) {
    %c0_i32 = arith.constant 0 : i32
    %c0_i32_0 = arith.constant 0 : i32
    %c0_i32_1 = arith.constant 0 : i32
    %c0_i32_2 = arith.constant 0 : i32
    return %c0_i32, %c0_i32_0, %c0_i32_1 : i32, i32, i32
  }
  func.func @transform_9(%arg0: i32) -> (i32, i32, i32) {
    %c0_i32 = arith.constant 0 : i32
    %c0_i32_0 = arith.constant 0 : i32
    %c0_i32_1 = arith.constant 0 : i32
    %c0_i32_2 = arith.constant 0 : i32
    return %c0_i32, %c0_i32_0, %c0_i32_1 : i32, i32, i32
  }
  func.func @transform_10(%arg0: i32) -> (i32, i32, i32) {
    %c0_i32 = arith.constant 0 : i32
    %c0_i32_0 = arith.constant 0 : i32
    %c0_i32_1 = arith.constant 0 : i32
    %c0_i32_2 = arith.constant 0 : i32
    return %c0_i32, %c0_i32_0, %c0_i32_1 : i32, i32, i32
  }
  func.func @transform_11(%arg0: i32) -> (i32, i32, i32) {
    %c0_i32 = arith.constant 0 : i32
    %c0_i32_0 = arith.constant 0 : i32
    %c0_i32_1 = arith.constant 0 : i32
    %c0_i32_2 = arith.constant 0 : i32
    return %c0_i32, %c0_i32_0, %c0_i32_1 : i32, i32, i32
  }
  func.func @transform_12(%arg0: i32) -> (i32, i32, i32) {
    %c0_i32 = arith.constant 0 : i32
    %c0_i32_0 = arith.constant 0 : i32
    %c0_i32_1 = arith.constant 0 : i32
    %c0_i32_2 = arith.constant 0 : i32
    return %c0_i32, %c0_i32_0, %c0_i32_1 : i32, i32, i32
  }
  func.func @transform_13(%arg0: i32) -> (i32, i32, i32) {
    %c0_i32 = arith.constant 0 : i32
    %c0_i32_0 = arith.constant 0 : i32
    %c0_i32_1 = arith.constant 0 : i32
    %c0_i32_2 = arith.constant 0 : i32
    return %c0_i32, %c0_i32_0, %c0_i32_1 : i32, i32, i32
  }
  func.func @transform_14(%arg0: i32) -> (i32, i32, i32) {
    %c0_i32 = arith.constant 0 : i32
    %c0_i32_0 = arith.constant 0 : i32
    %c0_i32_1 = arith.constant 0 : i32
    %c0_i32_2 = arith.constant 0 : i32
    return %c0_i32, %c0_i32_0, %c0_i32_1 : i32, i32, i32
  }
  func.func @transform_15(%arg0: i32) -> (i32, i32, i32) {
    %c0_i32 = arith.constant 0 : i32
    %c0_i32_0 = arith.constant 0 : i32
    %c0_i32_1 = arith.constant 0 : i32
    %c0_i32_2 = arith.constant 0 : i32
    return %c0_i32, %c0_i32_0, %c0_i32_1 : i32, i32, i32
  }
  func.func @transform_16(%arg0: i32) -> (i32, i32) {
    %c0_i32 = arith.constant 0 : i32
    %c0_i32_0 = arith.constant 0 : i32
    %c0_i32_1 = arith.constant 0 : i32
    return %c0_i32, %c0_i32_0 : i32, i32
  }
  func.func @transform_17(%arg0: i32) -> (i32, i32) {
    %c0_i32 = arith.constant 0 : i32
    %c0_i32_0 = arith.constant 0 : i32
    %c0_i32_1 = arith.constant 0 : i32
    return %c0_i32, %c0_i32_0 : i32, i32
  }
  func.func @transform_18(%arg0: i32) -> (i32, i32) {
    %c0_i32 = arith.constant 0 : i32
    %c0_i32_0 = arith.constant 0 : i32
    %c0_i32_1 = arith.constant 0 : i32
    return %c0_i32, %c0_i32_0 : i32, i32
  }
  func.func @transform_19(%arg0: i32) -> (i32, i32) {
    %c0_i32 = arith.constant 0 : i32
    %c0_i32_0 = arith.constant 0 : i32
    %c0_i32_1 = arith.constant 0 : i32
    return %c0_i32, %c0_i32_0 : i32, i32
  }
  func.func @transform_20(%arg0: i32) -> (i32, i32, i32) {
    %c0_i32 = arith.constant 0 : i32
    %c0_i32_0 = arith.constant 0 : i32
    %c0_i32_1 = arith.constant 0 : i32
    return %arg0, %c0_i32, %c0_i32_0 : i32, i32, i32
  }
}

</mosaic_0001>

<llo_original>
// kernel: mcc_classifier_forward.1
$region0: #{mcc_classifier_forward.1}
  #allocation0 [shape = 'u32[]', space=smem, size = 0x4, offset = 0x4, fixed_abs, tag = 'smem constant byte address 0x4 - core index']
  #allocation1 [shape = 'u32[144,128]{1,0:T(1,128)}', space=vmem, size = 0x12000, scoped, tag = 'internal scratch']
  %s0 = inlined_call_operand.vmem [shape: f32[2,8,32], index: 0, kind: input, shape index: {}]
  %s1 = inlined_call_operand.vmem [shape: f32[2,1,8], index: 1, kind: input, shape index: {}]
  %s2 = inlined_call_operand.vmem [shape: f32[1,32], index: 2, kind: input, shape index: {}]
  %s3 = inlined_call_operand.vmem [shape: f32[1,32], index: 3, kind: input, shape index: {}]
  %s4 = inlined_call_operand.vmem [shape: f32[2,32,96], index: 4, kind: input, shape index: {}]
  %s5 = inlined_call_operand.vmem [shape: f32[2,1,96], index: 5, kind: input, shape index: {}]
  %s6 = inlined_call_operand.vmem [shape: f32[2,32,32], index: 6, kind: input, shape index: {}]
  %s7 = inlined_call_operand.vmem [shape: f32[2,1,32], index: 7, kind: input, shape index: {}]
  %s8 = inlined_call_operand.vmem [shape: f32[2,1,32], index: 8, kind: input, shape index: {}]
  %s9 = inlined_call_operand.vmem [shape: f32[2,1,32], index: 9, kind: input, shape index: {}]
  %s10 = inlined_call_operand.vmem [shape: f32[2,32,64], index: 10, kind: input, shape index: {}]
  %s11 = inlined_call_operand.vmem [shape: f32[2,1,64], index: 11, kind: input, shape index: {}]
  %s12 = inlined_call_operand.vmem [shape: f32[2,64,32], index: 12, kind: input, shape index: {}]
  %s13 = inlined_call_operand.vmem [shape: f32[2,1,32], index: 13, kind: input, shape index: {}]
  %s14 = inlined_call_operand.vmem [shape: f32[2,1,32], index: 14, kind: input, shape index: {}]
  %s15 = inlined_call_operand.vmem [shape: f32[2,1,32], index: 15, kind: input, shape index: {}]
  %s16 = inlined_call_operand.vmem [shape: f32[32,32], index: 16, kind: input, shape index: {}]
  %s17 = inlined_call_operand.vmem [shape: f32[1,32], index: 17, kind: input, shape index: {}]
  %s18 = inlined_call_operand.vmem [shape: f32[32,128], index: 18, kind: input, shape index: {}]
  %s19 = inlined_call_operand.vmem [shape: f32[1,128], index: 19, kind: input, shape index: {}]
  %s20 = inlined_call_operand.hbm [shape: f32[2,1,128], index: 20, kind: output, shape index: {}]
  %s21 = sld [smem:[#allocation0]]
  $region120: #{mcc_classifier_forward.1} parent=0
    _
  %s23 = ssub.s32 1, %s21
  %s24 = scalar_select 0, %s23, %s21
  $region1: #{mcc_classifier_forward.1} parent=0
    #allocation2 [shape = 'u8[1024]{0}', space=vmem, size = 0x400, scoped, tag = 'output window, operand 0']
    #allocation3 [shape = 's32[2]{0}', space=sflag, size = 0x8, scoped, tag = 'scoped memory for mcc_classifier_forward.1']
    %25 = vsyncpa [#allocation3], 0
    %s26 = scalar_lea.sflag [#allocation3], 1
    %27 = vsyncpa %s26, 0
    loop: start=0, step=1, limit=4
    $region2: #{mcc_classifier_forward.1} parent=1 // loop_pre_header
      _
    $region3: #{mcc_classifier_forward.1} parent=1 // loop_header
      %s29 = sphi 0, %s33
      %p30 = scmp.ge.s32.totalorder %s29, 4
      %s39 = sphi 0, %s41
      %s42 = sphi 0, %s39
      %s43 = sphi 0, %s42
      %s59 = sphi 0, %s43
      %s65 = sphi 0, %s67
      %s68 = sphi 0, %s65
      %s69 = sphi 0, %s68
      %s85 = sphi 0, %s69
      %s89 = sphi 0, %s89
      %s91 = sphi 0, %s89
      %s92 = sphi 0, %s91
      %s106 = sphi 0, %s92
      %s110 = sphi 0, %s110
      %s112 = sphi 0, %s110
      %s113 = sphi 0, %s112
      %s127 = sphi 0, %s113
      %s131 = sphi 0, %s131
      %s133 = sphi 0, %s131
      %s134 = sphi 0, %s133
      %s148 = sphi 0, %s134
      %s152 = sphi 0, %s152
      %s154 = sphi 0, %s152
      %s155 = sphi 0, %s154
      %s169 = sphi 0, %s155
      %s173 = sphi 0, %s173
      %s175 = sphi 0, %s173
      %s176 = sphi 0, %s175
      %s190 = sphi 0, %s176
      %s194 = sphi 0, %s194
      %s196 = sphi 0, %s194
      %s197 = sphi 0, %s196
      %s211 = sphi 0, %s197
      %s215 = sphi 0, %s215
      %s217 = sphi 0, %s215
      %s218 = sphi 0, %s217
      %s232 = sphi 0, %s218
      %s236 = sphi 0, %s236
      %s238 = sphi 0, %s236
      %s239 = sphi 0, %s238
      %s253 = sphi 0, %s239
      %s257 = sphi 0, %s257
      %s259 = sphi 0, %s257
      %s260 = sphi 0, %s259
      %s274 = sphi 0, %s260
      %s278 = sphi 0, %s278
      %s280 = sphi 0, %s278
      %s281 = sphi 0, %s280
      %s295 = sphi 0, %s281
      %s299 = sphi 0, %s299
      %s301 = sphi 0, %s299
      %s302 = sphi 0, %s301
      %s316 = sphi 0, %s302
      %s320 = sphi 0, %s320
      %s322 = sphi 0, %s320
      %s323 = sphi 0, %s322
      %s337 = sphi 0, %s323
      %s341 = sphi 0, %s341
      %s343 = sphi 0, %s341
      %s344 = sphi 0, %s343
      %s358 = sphi 0, %s344
      %s362 = sphi 0, %s362
      %s364 = sphi 0, %s362
      %s365 = sphi 0, %s364
      %s379 = sphi 0, %s365
      %s383 = sphi 0, %s383
      %s385 = sphi 0, %s383
      %s386 = sphi 0, %s385
      %s400 = sphi 0, %s386
      %s404 = sphi 0, %s404
      %s406 = sphi 0, %s404
      %s407 = sphi 0, %s406
      %s421 = sphi 0, %s407
      %s425 = sphi 0, %s425
      %s427 = sphi 0, %s425
      %s428 = sphi 0, %s427
      %s442 = sphi 0, %s428
      %s446 = sphi 0, %s446
      %s448 = sphi 0, %s446
      %s449 = sphi 0, %s448
      %s463 = sphi 0, %s449
      %s469 = sphi 0, %s471
      %s472 = sphi 0, %s469
      %s473 = sphi 0, %s472
      %s489 = sphi 0, %s473
    $region4: #{mcc_classifier_forward.1} parent=1 // loop_header_branch
      %32 = sbr.rel (%p30) target = $region8
    $region5: #{mcc_classifier_forward.1} parent=1 // loop_body
      %s34 = ssub.s32 %s29, 1
      %s35 = ssub.s32 %s29, 2
      %s36 = sadd.s32 %s29, 1
      %s37 = ssub.s32 %s29, %s36
      %p38 = scmp.eq.s32.totalorder %s37, 0
      %s40 = sadd.s32 %s39, 1
      %s41 = scalar_select %p38, %s39, %s40
      %p44 = pneg %p38
      %p45 = scmp.eq.s32.totalorder %s29, 1
      %p46 = por %p44, %p45
      %p47 = scmp.ne.s32.totalorder %s39, %s42
      %p48 = scmp.eq.s32.totalorder %s29, 0
      %p49 = por %p47, %p48
      %p50 = scmp.ne.s32.totalorder %s39, %s42
      %p51 = scmp.eq.s32.totalorder %s34, 1
      %p52 = por %p50, %p51
      %p53 = scmp.ne.s32.totalorder %s42, %s43
      %p54 = scmp.eq.s32.totalorder %s34, 0
      %p55 = por %p53, %p54
      %p56 = scmp.ne.s32.totalorder %s42, %s43
      %p57 = scmp.eq.s32.totalorder %s35, 1
      %p58 = por %p56, %p57
      %p60 = scmp.ne.s32.totalorder %s43, %s59
      %p61 = scmp.eq.s32.totalorder %s35, 0
      %p62 = por %p60, %p61
      %s63 = ssub.s32 %s29, %s36
      %p64 = scmp.eq.s32.totalorder %s63, 0
      %s66 = sadd.s32 %s65, 1
      %s67 = scalar_select %p64, %s65, %s66
      %p70 = pneg %p64
      %p71 = scmp.eq.s32.totalorder %s29, 1
      %p72 = por %p70, %p71
      %p73 = scmp.ne.s32.totalorder %s65, %s68
      %p74 = scmp.eq.s32.totalorder %s29, 0
      %p75 = por %p73, %p74
      %p76 = scmp.ne.s32.totalorder %s65, %s68
      %p77 = scmp.eq.s32.totalorder %s34, 1
      %p78 = por %p76, %p77
      %p79 = scmp.ne.s32.totalorder %s68, %s69
      %p80 = scmp.eq.s32.totalorder %s34, 0
      %p81 = por %p79, %p80
      %p82 = scmp.ne.s32.totalorder %s68, %s69
      %p83 = scmp.eq.s32.totalorder %s35, 1
      %p84 = por %p82, %p83
      %p86 = scmp.ne.s32.totalorder %s69, %s85
      %p87 = scmp.eq.s32.totalorder %s35, 0
      %p88 = por %p86, %p87
      %s90 = sadd.s32 %s89, 1
      %p93 = scmp.eq.s32.totalorder %s29, 1
      %p94 = scmp.ne.s32.totalorder %s89, %s91
      %p95 = scmp.eq.s32.totalorder %s29, 0
      %p96 = por %p94, %p95
      %p97 = scmp.ne.s32.totalorder %s89, %s91
      %p98 = scmp.eq.s32.totalorder %s34, 1
      %p99 = por %p97, %p98
      %p100 = scmp.ne.s32.totalorder %s91, %s92
      %p101 = scmp.eq.s32.totalorder %s34, 0
      %p102 = por %p100, %p101
      %p103 = scmp.ne.s32.totalorder %s91, %s92
      %p104 = scmp.eq.s32.totalorder %s35, 1
      %p105 = por %p103, %p104
      %p107 = scmp.ne.s32.totalorder %s92, %s106
      %p108 = scmp.eq.s32.totalorder %s35, 0
      %p109 = por %p107, %p108
      %s111 = sadd.s32 %s110, 1
      %p114 = scmp.eq.s32.totalorder %s29, 1
      %p115 = scmp.ne.s32.totalorder %s110, %s112
      %p116 = scmp.eq.s32.totalorder %s29, 0
      %p117 = por %p115, %p116
      %p118 = scmp.ne.s32.totalorder %s110, %s112
      %p119 = scmp.eq.s32.totalorder %s34, 1
      %p120 = por %p118, %p119
      %p121 = scmp.ne.s32.totalorder %s112, %s113
      %p122 = scmp.eq.s32.totalorder %s34, 0
      %p123 = por %p121, %p122
      %p124 = scmp.ne.s32.totalorder %s112, %s113
      %p125 = scmp.eq.s32.totalorder %s35, 1
      %p126 = por %p124, %p125
      %p128 = scmp.ne.s32.totalorder %s113, %s127
      %p129 = scmp.eq.s32.totalorder %s35, 0
      %p130 = por %p128, %p129
      %s132 = sadd.s32 %s131, 1
      %p135 = scmp.eq.s32.totalorder %s29, 1
      %p136 = scmp.ne.s32.totalorder %s131, %s133
      %p137 = scmp.eq.s32.totalorder %s29, 0
      %p138 = por %p136, %p137
      %p139 = scmp.ne.s32.totalorder %s131, %s133
      %p140 = scmp.eq.s32.totalorder %s34, 1
      %p141 = por %p139, %p140
      %p142 = scmp.ne.s32.totalorder %s133, %s134
      %p143 = scmp.eq.s32.totalorder %s34, 0
      %p144 = por %p142, %p143
      %p145 = scmp.ne.s32.totalorder %s133, %s134
      %p146 = scmp.eq.s32.totalorder %s35, 1
      %p147 = por %p145, %p146
      %p149 = scmp.ne.s32.totalorder %s134, %s148
      %p150 = scmp.eq.s32.totalorder %s35, 0
      %p151 = por %p149, %p150
      %s153 = sadd.s32 %s152, 1
      %p156 = scmp.eq.s32.totalorder %s29, 1
      %p157 = scmp.ne.s32.totalorder %s152, %s154
      %p158 = scmp.eq.s32.totalorder %s29, 0
      %p159 = por %p157, %p158
      %p160 = scmp.ne.s32.totalorder %s152, %s154
      %p161 = scmp.eq.s32.totalorder %s34, 1
      %p162 = por %p160, %p161
      %p163 = scmp.ne.s32.totalorder %s154, %s155
      %p164 = scmp.eq.s32.totalorder %s34, 0
      %p165 = por %p163, %p164
      %p166 = scmp.ne.s32.totalorder %s154, %s155
      %p167 = scmp.eq.s32.totalorder %s35, 1
      %p168 = por %p166, %p167
      %p170 = scmp.ne.s32.totalorder %s155, %s169
      %p171 = scmp.eq.s32.totalorder %s35, 0
      %p172 = por %p170, %p171
      %s174 = sadd.s32 %s173, 1
      %p177 = scmp.eq.s32.totalorder %s29, 1
      %p178 = scmp.ne.s32.totalorder %s173, %s175
      %p179 = scmp.eq.s32.totalorder %s29, 0
      %p180 = por %p178, %p179
      %p181 = scmp.ne.s32.totalorder %s173, %s175
      %p182 = scmp.eq.s32.totalorder %s34, 1
      %p183 = por %p181, %p182
      %p184 = scmp.ne.s32.totalorder %s175, %s176
      %p185 = scmp.eq.s32.totalorder %s34, 0
      %p186 = por %p184, %p185
      %p187 = scmp.ne.s32.totalorder %s175, %s176
      %p188 = scmp.eq.s32.totalorder %s35, 1
      %p189 = por %p187, %p188
      %p191 = scmp.ne.s32.totalorder %s176, %s190
      %p192 = scmp.eq.s32.totalorder %s35, 0
      %p193 = por %p191, %p192
      %s195 = sadd.s32 %s194, 1
      %p198 = scmp.eq.s32.totalorder %s29, 1
      %p199 = scmp.ne.s32.totalorder %s194, %s196
      %p200 = scmp.eq.s32.totalorder %s29, 0
      %p201 = por %p199, %p200
      %p202 = scmp.ne.s32.totalorder %s194, %s196
      %p203 = scmp.eq.s32.totalorder %s34, 1
      %p204 = por %p202, %p203
      %p205 = scmp.ne.s32.totalorder %s196, %s197
      %p206 = scmp.eq.s32.totalorder %s34, 0
      %p207 = por %p205, %p206
      %p208 = scmp.ne.s32.totalorder %s196, %s197
      %p209 = scmp.eq.s32.totalorder %s35, 1
      %p210 = por %p208, %p209
      %p212 = scmp.ne.s32.totalorder %s197, %s211
      %p213 = scmp.eq.s32.totalorder %s35, 0
      %p214 = por %p212, %p213
      %s216 = sadd.s32 %s215, 1
      %p219 = scmp.eq.s32.totalorder %s29, 1
      %p220 = scmp.ne.s32.totalorder %s215, %s217
      %p221 = scmp.eq.s32.totalorder %s29, 0
      %p222 = por %p220, %p221
      %p223 = scmp.ne.s32.totalorder %s215, %s217
      %p224 = scmp.eq.s32.totalorder %s34, 1
      %p225 = por %p223, %p224
      %p226 = scmp.ne.s32.totalorder %s217, %s218
      %p227 = scmp.eq.s32.totalorder %s34, 0
      %p228 = por %p226, %p227
      %p229 = scmp.ne.s32.totalorder %s217, %s218
      %p230 = scmp.eq.s32.totalorder %s35, 1
      %p231 = por %p229, %p230
      %p233 = scmp.ne.s32.totalorder %s218, %s232
      %p234 = scmp.eq.s32.totalorder %s35, 0
      %p235 = por %p233, %p234
      %s237 = sadd.s32 %s236, 1
      %p240 = scmp.eq.s32.totalorder %s29, 1
      %p241 = scmp.ne.s32.totalorder %s236, %s238
      %p242 = scmp.eq.s32.totalorder %s29, 0
      %p243 = por %p241, %p242
      %p244 = scmp.ne.s32.totalorder %s236, %s238
      %p245 = scmp.eq.s32.totalorder %s34, 1
      %p246 = por %p244, %p245
      %p247 = scmp.ne.s32.totalorder %s238, %s239
      %p248 = scmp.eq.s32.totalorder %s34, 0
      %p249 = por %p247, %p248
      %p250 = scmp.ne.s32.totalorder %s238, %s239
      %p251 = scmp.eq.s32.totalorder %s35, 1
      %p252 = por %p250, %p251
      %p254 = scmp.ne.s32.totalorder %s239, %s253
      %p255 = scmp.eq.s32.totalorder %s35, 0
      %p256 = por %p254, %p255
      %s258 = sadd.s32 %s257, 1
      %p261 = scmp.eq.s32.totalorder %s29, 1
      %p262 = scmp.ne.s32.totalorder %s257, %s259
      %p263 = scmp.eq.s32.totalorder %s29, 0
      %p264 = por %p262, %p263
      %p265 = scmp.ne.s32.totalorder %s257, %s259
      %p266 = scmp.eq.s32.totalorder %s34, 1
      %p267 = por %p265, %p266
      %p268 = scmp.ne.s32.totalorder %s259, %s260
      %p269 = scmp.eq.s32.totalorder %s34, 0
      %p270 = por %p268, %p269
      %p271 = scmp.ne.s32.totalorder %s259, %s260
      %p272 = scmp.eq.s32.totalorder %s35, 1
      %p273 = por %p271, %p272
      %p275 = scmp.ne.s32.totalorder %s260, %s274
      %p276 = scmp.eq.s32.totalorder %s35, 0
      %p277 = por %p275, %p276
      %s279 = sadd.s32 %s278, 1
      %p282 = scmp.eq.s32.totalorder %s29, 1
      %p283 = scmp.ne.s32.totalorder %s278, %s280
      %p284 = scmp.eq.s32.totalorder %s29, 0
      %p285 = por %p283, %p284
      %p286 = scmp.ne.s32.totalorder %s278, %s280
      %p287 = scmp.eq.s32.totalorder %s34, 1
      %p288 = por %p286, %p287
      %p289 = scmp.ne.s32.totalorder %s280, %s281
      %p290 = scmp.eq.s32.totalorder %s34, 0
      %p291 = por %p289, %p290
      %p292 = scmp.ne.s32.totalorder %s280, %s281
      %p293 = scmp.eq.s32.totalorder %s35, 1
      %p294 = por %p292, %p293
      %p296 = scmp.ne.s32.totalorder %s281, %s295
      %p297 = scmp.eq.s32.totalorder %s35, 0
      %p298 = por %p296, %p297
      %s300 = sadd.s32 %s299, 1
      %p303 = scmp.eq.s32.totalorder %s29, 1
      %p304 = scmp.ne.s32.totalorder %s299, %s301
      %p305 = scmp.eq.s32.totalorder %s29, 0
      %p306 = por %p304, %p305
      %p307 = scmp.ne.s32.totalorder %s299, %s301
      %p308 = scmp.eq.s32.totalorder %s34, 1
      %p309 = por %p307, %p308
      %p310 = scmp.ne.s32.totalorder %s301, %s302
      %p311 = scmp.eq.s32.totalorder %s34, 0
      %p312 = por %p310, %p311
      %p313 = scmp.ne.s32.totalorder %s301, %s302
      %p314 = scmp.eq.s32.totalorder %s35, 1
      %p315 = por %p313, %p314
      %p317 = scmp.ne.s32.totalorder %s302, %s316
      %p318 = scmp.eq.s32.totalorder %s35, 0
      %p319 = por %p317, %p318
      %s321 = sadd.s32 %s320, 1
      %p324 = scmp.eq.s32.totalorder %s29, 1
      %p325 = scmp.ne.s32.totalorder %s320, %s322
      %p326 = scmp.eq.s32.totalorder %s29, 0
      %p327 = por %p325, %p326
      %p328 = scmp.ne.s32.totalorder %s320, %s322
      %p329 = scmp.eq.s32.totalorder %s34, 1
      %p330 = por %p328, %p329
      %p331 = scmp.ne.s32.totalorder %s322, %s323
      %p332 = scmp.eq.s32.totalorder %s34, 0
      %p333 = por %p331, %p332
      %p334 = scmp.ne.s32.totalorder %s322, %s323
      %p335 = scmp.eq.s32.totalorder %s35, 1
      %p336 = por %p334, %p335
      %p338 = scmp.ne.s32.totalorder %s323, %s337
      %p339 = scmp.eq.s32.totalorder %s35, 0
      %p340 = por %p338, %p339
      %s342 = sadd.s32 %s341, 1
      %p345 = scmp.eq.s32.totalorder %s29, 1
      %p346 = scmp.ne.s32.totalorder %s341, %s343
      %p347 = scmp.eq.s32.totalorder %s29, 0
      %p348 = por %p346, %p347
      %p349 = scmp.ne.s32.totalorder %s341, %s343
      %p350 = scmp.eq.s32.totalorder %s34, 1
      %p351 = por %p349, %p350
      %p352 = scmp.ne.s32.totalorder %s343, %s344
      %p353 = scmp.eq.s32.totalorder %s34, 0
      %p354 = por %p352, %p353
      %p355 = scmp.ne.s32.totalorder %s343, %s344
      %p356 = scmp.eq.s32.totalorder %s35, 1
      %p357 = por %p355, %p356
      %p359 = scmp.ne.s32.totalorder %s344, %s358
      %p360 = scmp.eq.s32.totalorder %s35, 0
      %p361 = por %p359, %p360
      %s363 = sadd.s32 %s362, 1
      %p366 = scmp.eq.s32.totalorder %s29, 1
      %p367 = scmp.ne.s32.totalorder %s362, %s364
      %p368 = scmp.eq.s32.totalorder %s29, 0
      %p369 = por %p367, %p368
      %p370 = scmp.ne.s32.totalorder %s362, %s364
      %p371 = scmp.eq.s32.totalorder %s34, 1
      %p372 = por %p370, %p371
      %p373 = scmp.ne.s32.totalorder %s364, %s365
      %p374 = scmp.eq.s32.totalorder %s34, 0
      %p375 = por %p373, %p374
      %p376 = scmp.ne.s32.totalorder %s364, %s365
      %p377 = scmp.eq.s32.totalorder %s35, 1
      %p378 = por %p376, %p377
      %p380 = scmp.ne.s32.totalorder %s365, %s379
      %p381 = scmp.eq.s32.totalorder %s35, 0
      %p382 = por %p380, %p381
      %s384 = sadd.s32 %s383, 1
      %p387 = scmp.eq.s32.totalorder %s29, 1
      %p388 = scmp.ne.s32.totalorder %s383, %s385
      %p389 = scmp.eq.s32.totalorder %s29, 0
      %p390 = por %p388, %p389
      %p391 = scmp.ne.s32.totalorder %s383, %s385
      %p392 = scmp.eq.s32.totalorder %s34, 1
      %p393 = por %p391, %p392
      %p394 = scmp.ne.s32.totalorder %s385, %s386
      %p395 = scmp.eq.s32.totalorder %s34, 0
      %p396 = por %p394, %p395
      %p397 = scmp.ne.s32.totalorder %s385, %s386
      %p398 = scmp.eq.s32.totalorder %s35, 1
      %p399 = por %p397, %p398
      %p401 = scmp.ne.s32.totalorder %s386, %s400
      %p402 = scmp.eq.s32.totalorder %s35, 0
      %p403 = por %p401, %p402
      %s405 = sadd.s32 %s404, 1
      %p408 = scmp.eq.s32.totalorder %s29, 1
      %p409 = scmp.ne.s32.totalorder %s404, %s406
      %p410 = scmp.eq.s32.totalorder %s29, 0
      %p411 = por %p409, %p410
      %p412 = scmp.ne.s32.totalorder %s404, %s406
      %p413 = scmp.eq.s32.totalorder %s34, 1
      %p414 = por %p412, %p413
      %p415 = scmp.ne.s32.totalorder %s406, %s407
      %p416 = scmp.eq.s32.totalorder %s34, 0
      %p417 = por %p415, %p416
      %p418 = scmp.ne.s32.totalorder %s406, %s407
      %p419 = scmp.eq.s32.totalorder %s35, 1
      %p420 = por %p418, %p419
      %p422 = scmp.ne.s32.totalorder %s407, %s421
      %p423 = scmp.eq.s32.totalorder %s35, 0
      %p424 = por %p422, %p423
      %s426 = sadd.s32 %s425, 1
      %p429 = scmp.eq.s32.totalorder %s29, 1
      %p430 = scmp.ne.s32.totalorder %s425, %s427
      %p431 = scmp.eq.s32.totalorder %s29, 0
      %p432 = por %p430, %p431
      %p433 = scmp.ne.s32.totalorder %s425, %s427
      %p434 = scmp.eq.s32.totalorder %s34, 1
      %p435 = por %p433, %p434
      %p436 = scmp.ne.s32.totalorder %s427, %s428
      %p437 = scmp.eq.s32.totalorder %s34, 0
      %p438 = por %p436, %p437
      %p439 = scmp.ne.s32.totalorder %s427, %s428
      %p440 = scmp.eq.s32.totalorder %s35, 1
      %p441 = por %p439, %p440
      %p443 = scmp.ne.s32.totalorder %s428, %s442
      %p444 = scmp.eq.s32.totalorder %s35, 0
      %p445 = por %p443, %p444
      %s447 = sadd.s32 %s446, 1
      %p450 = scmp.eq.s32.totalorder %s29, 1
      %p451 = scmp.ne.s32.totalorder %s446, %s448
      %p452 = scmp.eq.s32.totalorder %s29, 0
      %p453 = por %p451, %p452
      %p454 = scmp.ne.s32.totalorder %s446, %s448
      %p455 = scmp.eq.s32.totalorder %s34, 1
      %p456 = por %p454, %p455
      %p457 = scmp.ne.s32.totalorder %s448, %s449
      %p458 = scmp.eq.s32.totalorder %s34, 0
      %p459 = por %p457, %p458
      %p460 = scmp.ne.s32.totalorder %s448, %s449
      %p461 = scmp.eq.s32.totalorder %s35, 1
      %p462 = por %p460, %p461
      %p464 = scmp.ne.s32.totalorder %s449, %s463
      %p465 = scmp.eq.s32.totalorder %s35, 0
      %p466 = por %p464, %p465
      %s467 = ssub.s32 %s29, %s36
      %p468 = scmp.eq.s32.totalorder %s467, 0
      %s470 = sadd.s32 %s469, 1
      %s471 = scalar_select %p468, %s469, %s470
      %p474 = pneg %p468
      %p475 = scmp.eq.s32.totalorder %s29, 1
      %p476 = por %p474, %p475
      %p477 = scmp.ne.s32.totalorder %s469, %s472
      %p478 = scmp.eq.s32.totalorder %s29, 0
      %p479 = por %p477, %p478
      %p480 = scmp.ne.s32.totalorder %s469, %s472
      %p481 = scmp.eq.s32.totalorder %s34, 1
      %p482 = por %p480, %p481
      %p483 = scmp.ne.s32.totalorder %s472, %s473
      %p484 = scmp.eq.s32.totalorder %s34, 0
      %p485 = por %p483, %p484
      %p486 = scmp.ne.s32.totalorder %s472, %s473
      %p487 = scmp.eq.s32.totalorder %s35, 1
      %p488 = por %p486, %p487
      %p490 = scmp.ne.s32.totalorder %s473, %s489
      %p491 = scmp.eq.s32.totalorder %s35, 0
      %p492 = por %p490, %p491
      %p493 = scmp.le.s32.totalorder 1, %s29
      %p494 = scmp.lt.s32.totalorder %s29, 3
      %p495 = pnand %p493, %p494
      %p496 = pneg %p495
      // Predicated region
      $region9: #{mcc_classifier_forward.1} parent=5 // pred_check
        _
      $region10: #{mcc_classifier_forward.1} parent=5 // pred_check_branch
        %498 = sbr.rel (%p495) target = $region12
      $region11: #{mcc_classifier_forward.1} parent=5 // pred_region
        %s499 = ssub.s32 %s29, 1
        // Predicated region
        $region13: #{mcc_classifier_forward.1} parent=11 // pred_check
          %p500 = pneg %p102
        $region14: #{mcc_classifier_forward.1} parent=11 // pred_check_branch
          %502 = sbr.rel (%p500) target = $region16
        $region15: #{mcc_classifier_forward.1} parent=11 // pred_region
          _
        $region16: #{mcc_classifier_forward.1} parent=11 // pred_fallthru
          _
        // Predicated region
        $region17: #{mcc_classifier_forward.1} parent=11 // pred_check
          %p503 = pneg %p123
        $region18: #{mcc_classifier_forward.1} parent=11 // pred_check_branch
          %505 = sbr.rel (%p503) target = $region20
        $region19: #{mcc_classifier_forward.1} parent=11 // pred_region
          _
        $region20: #{mcc_classifier_forward.1} parent=11 // pred_fallthru
          _
        // Predicated region
        $region21: #{mcc_classifier_forward.1} parent=11 // pred_check
          %p506 = pneg %p144
        $region22: #{mcc_classifier_forward.1} parent=11 // pred_check_branch
          %508 = sbr.rel (%p506) target = $region24
        $region23: #{mcc_classifier_forward.1} parent=11 // pred_region
          _
        $region24: #{mcc_classifier_forward.1} parent=11 // pred_fallthru
          _
        // Predicated region
        $region25: #{mcc_classifier_forward.1} parent=11 // pred_check
          %p509 = pneg %p165
        $region26: #{mcc_classifier_forward.1} parent=11 // pred_check_branch
          %511 = sbr.rel (%p509) target = $region28
        $region27: #{mcc_classifier_forward.1} parent=11 // pred_region
          _
        $region28: #{mcc_classifier_forward.1} parent=11 // pred_fallthru
          _
        // Predicated region
        $region29: #{mcc_classifier_forward.1} parent=11 // pred_check
          %p512 = pneg %p186
        $region30: #{mcc_classifier_forward.1} parent=11 // pred_check_branch
          %514 = sbr.rel (%p512) target = $region32
        $region31: #{mcc_classifier_forward.1} parent=11 // pred_region
          _
        $region32: #{mcc_classifier_forward.1} parent=11 // pred_fallthru
          _
        // Predicated region
        $region33: #{mcc_classifier_forward.1} parent=11 // pred_check
          %p515 = pneg %p207
        $region34: #{mcc_classifier_forward.1} parent=11 // pred_check_branch
          %517 = sbr.rel (%p515) target = $region36
        $region35: #{mcc_classifier_forward.1} parent=11 // pred_region
          _
        $region36: #{mcc_classifier_forward.1} parent=11 // pred_fallthru
          _
        // Predicated region
        $region37: #{mcc_classifier_forward.1} parent=11 // pred_check
          %p518 = pneg %p228
        $region38: #{mcc_classifier_forward.1} parent=11 // pred_check_branch
          %520 = sbr.rel (%p518) target = $region40
        $region39: #{mcc_classifier_forward.1} parent=11 // pred_region
          _
        $region40: #{mcc_classifier_forward.1} parent=11 // pred_fallthru
          _
        // Predicated region
        $region41: #{mcc_classifier_forward.1} parent=11 // pred_check
          %p521 = pneg %p249
        $region42: #{mcc_classifier_forward.1} parent=11 // pred_check_branch
          %523 = sbr.rel (%p521) target = $region44
        $region43: #{mcc_classifier_forward.1} parent=11 // pred_region
          _
        $region44: #{mcc_classifier_forward.1} parent=11 // pred_fallthru
          _
        // Predicated region
        $region45: #{mcc_classifier_forward.1} parent=11 // pred_check
          %p524 = pneg %p270
        $region46: #{mcc_classifier_forward.1} parent=11 // pred_check_branch
          %526 = sbr.rel (%p524) target = $region48
        $region47: #{mcc_classifier_forward.1} parent=11 // pred_region
          _
        $region48: #{mcc_classifier_forward.1} parent=11 // pred_fallthru
          _
        // Predicated region
        $region49: #{mcc_classifier_forward.1} parent=11 // pred_check
          %p527 = pneg %p291
        $region50: #{mcc_classifier_forward.1} parent=11 // pred_check_branch
          %529 = sbr.rel (%p527) target = $region52
        $region51: #{mcc_classifier_forward.1} parent=11 // pred_region
          _
        $region52: #{mcc_classifier_forward.1} parent=11 // pred_fallthru
          _
        // Predicated region
        $region53: #{mcc_classifier_forward.1} parent=11 // pred_check
          %p530 = pneg %p312
        $region54: #{mcc_classifier_forward.1} parent=11 // pred_check_branch
          %532 = sbr.rel (%p530) target = $region56
        $region55: #{mcc_classifier_forward.1} parent=11 // pred_region
          _
        $region56: #{mcc_classifier_forward.1} parent=11 // pred_fallthru
          _
        // Predicated region
        $region57: #{mcc_classifier_forward.1} parent=11 // pred_check
          %p533 = pneg %p333
        $region58: #{mcc_classifier_forward.1} parent=11 // pred_check_branch
          %535 = sbr.rel (%p533) target = $region60
        $region59: #{mcc_classifier_forward.1} parent=11 // pred_region
          _
        $region60: #{mcc_classifier_forward.1} parent=11 // pred_fallthru
          _
        // Predicated region
        $region61: #{mcc_classifier_forward.1} parent=11 // pred_check
          %p536 = pneg %p354
        $region62: #{mcc_classifier_forward.1} parent=11 // pred_check_branch
          %538 = sbr.rel (%p536) target = $region64
        $region63: #{mcc_classifier_forward.1} parent=11 // pred_region
          _
        $region64: #{mcc_classifier_forward.1} parent=11 // pred_fallthru
          _
        // Predicated region
        $region65: #{mcc_classifier_forward.1} parent=11 // pred_check
          %p539 = pneg %p375
        $region66: #{mcc_classifier_forward.1} parent=11 // pred_check_branch
          %541 = sbr.rel (%p539) target = $region68
        $region67: #{mcc_classifier_forward.1} parent=11 // pred_region
          _
        $region68: #{mcc_classifier_forward.1} parent=11 // pred_fallthru
          _
        // Predicated region
        $region69: #{mcc_classifier_forward.1} parent=11 // pred_check
          %p542 = pneg %p396
        $region70: #{mcc_classifier_forward.1} parent=11 // pred_check_branch
          %544 = sbr.rel (%p542) target = $region72
        $region71: #{mcc_classifier_forward.1} parent=11 // pred_region
          _
        $region72: #{mcc_classifier_forward.1} parent=11 // pred_fallthru
          _
        // Predicated region
        $region73: #{mcc_classifier_forward.1} parent=11 // pred_check
          %p545 = pneg %p417
        $region74: #{mcc_classifier_forward.1} parent=11 // pred_check_branch
          %547 = sbr.rel (%p545) target = $region76
        $region75: #{mcc_classifier_forward.1} parent=11 // pred_region
          _
        $region76: #{mcc_classifier_forward.1} parent=11 // pred_fallthru
          _
        // Predicated region
        $region77: #{mcc_classifier_forward.1} parent=11 // pred_check
          %p548 = pneg %p438
        $region78: #{mcc_classifier_forward.1} parent=11 // pred_check_branch
          %550 = sbr.rel (%p548) target = $region80
        $region79: #{mcc_classifier_forward.1} parent=11 // pred_region
          _
        $region80: #{mcc_classifier_forward.1} parent=11 // pred_fallthru
          _
        // Predicated region
        $region81: #{mcc_classifier_forward.1} parent=11 // pred_check
          %p551 = pneg %p459
        $region82: #{mcc_classifier_forward.1} parent=11 // pred_check_branch
          %553 = sbr.rel (%p551) target = $region84
        $region83: #{mcc_classifier_forward.1} parent=11 // pred_region
          _
        $region84: #{mcc_classifier_forward.1} parent=11 // pred_fallthru
          _
      $region12: #{mcc_classifier_forward.1} parent=5 // pred_fallthru
        _
      %p554 = scmp.lt.s32.totalorder %s29, 2
      // Predicated region
      $region85: #{mcc_classifier_forward.1} parent=5 // pred_check
        %p555 = pneg %p554
      $region86: #{mcc_classifier_forward.1} parent=5 // pred_check_branch
        %557 = sbr.rel (%p555) target = $region88
      $region87: #{mcc_classifier_forward.1} parent=5 // pred_region
        // Predicated region
        $region89: #{mcc_classifier_forward.1} parent=87 // pred_check
          %p558 = pneg %p49
        $region90: #{mcc_classifier_forward.1} parent=87 // pred_check_branch
          %560 = sbr.rel (%p558) target = $region92
        $region91: #{mcc_classifier_forward.1} parent=87 // pred_region
          %p561 = scmp.lt.s32.totalorder %s29, 1
          %s562 = scalar_select %p561, %s29, 1
          %s563 = smul.addr %s562, 8
          %s564 = scalar_lea.vmem %s0, %s563
        $region92: #{mcc_classifier_forward.1} parent=87 // pred_fallthru
          _
        // Predicated region
        $region93: #{mcc_classifier_forward.1} parent=87 // pred_check
          %p565 = pneg %p75
        $region94: #{mcc_classifier_forward.1} parent=87 // pred_check_branch
          %567 = sbr.rel (%p565) target = $region96
        $region95: #{mcc_classifier_forward.1} parent=87 // pred_region
          %p568 = scmp.lt.s32.totalorder %s29, 1
          %s569 = scalar_select %p568, %s29, 1
          %s570 = scalar_lea.vmem %s1, %s569
        $region96: #{mcc_classifier_forward.1} parent=87 // pred_fallthru
          _
      $region88: #{mcc_classifier_forward.1} parent=5 // pred_fallthru
        _
      %p571 = scmp.le.s32.totalorder 1, %s29
      %p572 = scmp.lt.s32.totalorder %s29, 3
      %p573 = pnand %p571, %p572
      %p574 = pneg %p573
      // Predicated region
      $region97: #{mcc_classifier_forward.1} parent=5 // pred_check
        _
      $region98: #{mcc_classifier_forward.1} parent=5 // pred_check_branch
        %576 = sbr.rel (%p573) target = $region100
      $region99: #{mcc_classifier_forward.1} parent=5 // pred_region
        %s577 = ssub.s32 %s29, 1
        %p578 = scmp.lt.s32.totalorder %s34, 1
        %s579 = scalar_select %p578, %s34, 1
        %s580 = smul.addr %s579, 8
        %s581 = scalar_lea.vmem %s0, %s580
        %p582 = pneg %p55
        %p583 = pneg %p52
        %p584 = scmp.lt.s32.totalorder %s34, 1
        %s585 = scalar_select %p584, %s34, 1
        %s586 = scalar_lea.vmem %s1, %s585
        %p587 = pneg %p81
        %p588 = pneg %p78
        %p589 = pneg %p102
        %p590 = pneg %p99
        %p591 = pneg %p123
        %p592 = pneg %p120
        %p593 = pneg %p144
        %p594 = pneg %p141
        %p595 = pneg %p165
        %p596 = pneg %p162
        %p597 = pneg %p186
        %p598 = pneg %p183
        %p599 = pneg %p207
        %p600 = pneg %p204
        %p601 = pneg %p228
        %p602 = pneg %p225
        %p603 = pneg %p249
        %p604 = pneg %p246
        %p605 = pneg %p270
        %p606 = pneg %p267
        %p607 = pneg %p291
        %p608 = pneg %p288
        %p609 = pneg %p312
        %p610 = pneg %p309
        %p611 = pneg %p333
        %p612 = pneg %p330
        %p613 = pneg %p354
        %p614 = pneg %p351
        %p615 = pneg %p375
        %p616 = pneg %p372
        %p617 = pneg %p396
        %p618 = pneg %p393
        %p619 = pneg %p417
        %p620 = pneg %p414
        %p621 = pneg %p438
        %p622 = pneg %p435
        %p623 = pneg %p459
        %p624 = pneg %p456
        %p625 = pneg %p485
        %p626 = pneg %p482
        %s627 = sand.u32 %s472, 1
        %s628 = scalar_lea.sflag [#allocation3], %s627
        %s629 = sand.u32 %s472, 1
        %s630 = scalar_lea.vmem [#allocation2], %s629
        %p631 = scmp.lt.s32.totalorder %s34, 1
        %s632 = scalar_select %p631, %s34, 1
        %s633 = smul.addr %s632, 8
        %s634 = scalar_lea.vmem %s0, %s633
        %p635 = scmp.lt.s32.totalorder %s34, 1
        %s636 = scalar_select %p635, %s34, 1
        %s637 = scalar_lea.vmem %s1, %s636
        %v638 = vld [vmem:[%s637] sm:$0x1]
        %v639 = vld [vmem:[%s634] sm:$0xff]
        %v640 = vld [vmem:[%s2] sm:$0x1]
        %v641 = vld [vmem:[%s3] sm:$0x1]
        %vm642 = vcmask 261120
        %v643 = vsel %vm642, %v639, 0.0
        %644 = vadd.xlane.f32.xlu0 %v643
        %v645 = vpop.xlane.xlu0 %644
        %v646 = vrcp.pop 32.0
        %v647 = vmul.f32 %v645, %v646
        %v648 = vsub.f32 %v639, %v647
        %v649 = vmul.f32 %v648, %v648
        %v650 = vsel %vm642, %v649, 0.0
        %651 = vadd.xlane.f32.xlu0 %v650
        %v652 = vpop.xlane.xlu0 %651
        %v653 = vmul.f32 %v652, %v646
        %v654 = vadd.f32 %v653, 1e-12
        %v655 = vrsqrt.pop %v654
        %v656 = vmul.f32 %v648, %v655
        %v658 = vlaneseq
        %v659 = vshrl.u32 %v658, 7
        %v660 = vsub.s32 0, %v659
        %v661 = vrot.slane %v640, %v660
        %v663 = vmul.f32 %v656, %v661
        %v665 = vlaneseq
        %v666 = vshrl.u32 %v665, 7
        %v667 = vsub.s32 0, %v666
        %v668 = vrot.slane %v641, %v667
        %v670 = vadd.f32 %v663, %v668
        loop: start=0, step=1, limit=2
        $region101: #{mcc_classifier_forward.1} parent=99 // loop_pre_header
          _
        $region102: #{mcc_classifier_forward.1} parent=99 // loop_header
          %s672 = sphi 0, %s676
          %p673 = scmp.ge.s32.totalorder %s672, 2
          %v677 = vphi %v670, %v1516
        $region103: #{mcc_classifier_forward.1} parent=99 // loop_header_branch
          %675 = sbr.rel (%p673) target = $region107
        $region104: #{mcc_classifier_forward.1} parent=99 // loop_body
          %s678 = smul.u32 %s672, 32
          %s679 = scalar_lea.vmem %s4, %s678
          %v680 = vld [vmem:[%s679] sm:$0xff]
          %v681 = vld [vmem:[%s679 + $0x8] sm:$0xff]
          %v682 = vld [vmem:[%s679 + $0x10] sm:$0xff]
          %v683 = vld [vmem:[%s679 + $0x18] sm:$0xff]
          %s684 = scalar_lea.vmem %s5, %s672
          %v685 = vld [vmem:[%s684] sm:$0x1]
          %v687 = vlaneseq
          %v688 = vshrl.u32 %v687, 7
          %v689 = vsub.s32 0, %v688
          %v690 = vrot.slane %v685, %v689
          %v693 = vsel %vm642, %v677, 0
          %695 = vmatprep.subr.mxu0 0.0
          %696 = vmatpush1.msra.mxu0 %v680
          %697 = vmatprep.subr.mxu0 0.0
          %698 = vmatpush1.msra.mxu0 %v681
          %699 = vmatprep.subr.mxu0 0.0
          %700 = vmatpush1.msra.mxu0 %v682
          %701 = vmatprep.subr.mxu0 0.0
          %702 = vmatpush1.msra.mxu0 %v683
          %703 = vmatprep.subr.mxu0 0.0
          %704 = vmatpush1.msra.mxu0 0.0
          %705 = vmatprep.subr.mxu0 0.0
          %706 = vmatpush1.msra.mxu0 0.0
          %707 = vmatprep.subr.mxu0 0.0
          %708 = vmatpush1.msra.mxu0 0.0
          %709 = vmatprep.subr.mxu0 0.0
          %710 = vmatpush1.msra.mxu0 0.0
          %711 = vmatprep.subr.mxu0 0.0
          %712 = vmatpush1.msra.mxu0 0.0
          %713 = vmatprep.subr.mxu0 0.0
          %714 = vmatpush1.msra.mxu0 0.0
          %715 = vmatprep.subr.mxu0 0.0
          %716 = vmatpush1.msra.mxu0 0.0
          %717 = vmatprep.subr.mxu0 0.0
          %718 = vmatpush1.msra.mxu0 0.0
          %719 = vmatprep.subr.mxu0 0.0
          %720 = vmatpush1.msra.mxu0 0.0
          %721 = vmatprep.subr.mxu0 0.0
          %722 = vmatpush1.msra.mxu0 0.0
          %723 = vmatprep.subr.mxu0 0.0
          %724 = vmatpush1.msra.mxu0 0.0
          %725 = vmatprep.subr.mxu0 0.0
          %726 = vmatpush1.msra.mxu0 0.0
          %727 = vmatprep.subr.mxu0 0.0
          %728 = vmatpush1.msra.mxu0 0.0
          %729 = vmatprep.subr.mxu0 0.0
          %730 = vmatpush1.msra.mxu0 0.0
          %731 = vmatprep.subr.mxu0 0.0
          %732 = vmatpush1.msra.mxu0 0.0
          %733 = vmatprep.subr.mxu0 0.0
          %734 = vmatpush1.msra.mxu0 0.0
          %735 = vmatprep.subr.mxu0 0.0
          %736 = vmatpush1.msra.mxu0 0.0
          %737 = vmatprep.subr.mxu0 0.0
          %738 = vmatpush1.msra.mxu0 0.0
          %739 = vmatprep.subr.mxu0 0.0
          %740 = vmatpush1.msra.mxu0 0.0
          %741 = vmatprep.subr.mxu0 0.0
          %742 = vmatpush1.msra.mxu0 0.0
          %743 = vmatprep.subr.mxu0 0.0
          %744 = vmatpush1.msra.mxu0 0.0
          %745 = vmatprep.subr.mxu0 0.0
          %746 = vmatpush1.msra.mxu0 0.0
          %747 = vmatprep.subr.mxu0 0.0
          %748 = vmatpush1.msra.mxu0 0.0
          %749 = vmatprep.subr.mxu0 0.0
          %750 = vmatpush1.msra.mxu0 0.0
          %751 = vmatprep.subr.mxu0 0.0
          %752 = vmatpush1.msra.mxu0 0.0
          %753 = vmatprep.subr.mxu0 0.0
          %754 = vmatpush1.msra.mxu0 0.0
          %755 = vmatprep.subr.mxu0 0.0
          %756 = vmatpush1.msra.mxu0 0.0
          %757 = vmatprep.subr.mxu0 0.0
          %758 = vmatpush1.msra.mxu0 0.0
          %759 = vmatprep.mubr.f32.mxu0 0.0
          %760 = vmatmul.mubr.f32.gmra.mrb[0].mxu0 %v693
          %v761 = vpop.f32.mrb[0].mxu0
          %v762 = vadd.f32 %v690, %v761
          %v763 = vpop.f32.mrb[0].mxu0
          %764 = vdwg.mxu0
          %s765 = scalar_lea.vmem %s6, %s678
          %v766 = vld [vmem:[%s765] sm:$0xff]
          %v767 = vld [vmem:[%s765 + $0x8] sm:$0xff]
          %v768 = vld [vmem:[%s765 + $0x10] sm:$0xff]
          %v769 = vld [vmem:[%s765 + $0x18] sm:$0xff]
          %771 = vrot.lane.b32.xlu0 %v762, 96
          %v772 = vpop.permute.xlu0 %771
          %vm773 = vcmask 130048
          %v774 = vsel %vm773, %v762, 0
          %v776 = vsel %vm773, %v772, 0
          %778 = vmatprep.subr.mxu0 0.0
          %779 = vmatpush1.xpose.msra.mxu0 %v776
          %780 = vmatprep.subr.mxu0 0.0
          %781 = vmatpush1.xpose.msra.mxu0 0.0
          %782 = vmatprep.subr.mxu0 0.0
          %783 = vmatpush1.xpose.msra.mxu0 0.0
          %784 = vmatprep.subr.mxu0 0.0
          %785 = vmatpush1.xpose.msra.mxu0 0.0
          %786 = vmatprep.subr.mxu0 0.0
          %787 = vmatpush1.xpose.msra.mxu0 0.0
          %788 = vmatprep.subr.mxu0 0.0
          %789 = vmatpush1.xpose.msra.mxu0 0.0
          %790 = vmatprep.subr.mxu0 0.0
          %791 = vmatpush1.xpose.msra.mxu0 0.0
          %792 = vmatprep.subr.mxu0 0.0
          %793 = vmatpush1.xpose.msra.mxu0 0.0
          %794 = vmatprep.subr.mxu0 0.0
          %795 = vmatpush1.xpose.msra.mxu0 0.0
          %796 = vmatprep.subr.mxu0 0.0
          %797 = vmatpush1.xpose.msra.mxu0 0.0
          %798 = vmatprep.subr.mxu0 0.0
          %799 = vmatpush1.xpose.msra.mxu0 0.0
          %800 = vmatprep.subr.mxu0 0.0
          %801 = vmatpush1.xpose.msra.mxu0 0.0
          %802 = vmatprep.subr.mxu0 0.0
          %803 = vmatpush1.xpose.msra.mxu0 0.0
          %804 = vmatprep.subr.mxu0 0.0
          %805 = vmatpush1.xpose.msra.mxu0 0.0
          %806 = vmatprep.subr.mxu0 0.0
          %807 = vmatpush1.xpose.msra.mxu0 0.0
          %808 = vmatprep.subr.mxu0 0.0
          %809 = vmatpush1.xpose.msra.mxu0 0.0
          %810 = vmatprep.subr.mxu0 0.0
          %811 = vmatpush1.xpose.msra.mxu0 0.0
          %812 = vmatprep.subr.mxu0 0.0
          %813 = vmatpush1.xpose.msra.mxu0 0.0
          %814 = vmatprep.subr.mxu0 0.0
          %815 = vmatpush1.xpose.msra.mxu0 0.0
          %816 = vmatprep.subr.mxu0 0.0
          %817 = vmatpush1.xpose.msra.mxu0 0.0
          %818 = vmatprep.subr.mxu0 0.0
          %819 = vmatpush1.xpose.msra.mxu0 0.0
          %820 = vmatprep.subr.mxu0 0.0
          %821 = vmatpush1.xpose.msra.mxu0 0.0
          %822 = vmatprep.subr.mxu0 0.0
          %823 = vmatpush1.xpose.msra.mxu0 0.0
          %824 = vmatprep.subr.mxu0 0.0
          %825 = vmatpush1.xpose.msra.mxu0 0.0
          %826 = vmatprep.subr.mxu0 0.0
          %827 = vmatpush1.xpose.msra.mxu0 0.0
          %828 = vmatprep.subr.mxu0 0.0
          %829 = vmatpush1.xpose.msra.mxu0 0.0
          %830 = vmatprep.subr.mxu0 0.0
          %831 = vmatpush1.xpose.msra.mxu0 0.0
          %832 = vmatprep.subr.mxu0 0.0
          %833 = vmatpush1.xpose.msra.mxu0 0.0
          %834 = vmatprep.subr.mxu0 0.0
          %835 = vmatpush1.xpose.msra.mxu0 0.0
          %836 = vmatprep.subr.mxu0 0.0
          %837 = vmatpush1.xpose.msra.mxu0 0.0
          %838 = vmatprep.subr.mxu0 0.0
          %839 = vmatpush1.xpose.msra.mxu0 0.0
          %840 = vmatprep.subr.mxu0 0.0
          %841 = vmatpush1.xpose.msra.mxu0 0.0
          %842 = vmatprep.mubr.f32.mxu0 0.0
          %843 = vmatmul.mubr.f32.gmra.mrb[0].mxu0 %v774
          %v844 = vpop.f32.mrb[0].mxu0
          %v845 = vadd.f32 0.0, %v844
          %v846 = vpop.f32.mrb[0].mxu0
          %847 = vdwg.mxu0
          %v848 = vmul.f32 %v845, 0.25
          %v850 = vlaneseq
          %v851 = vshrl.u32 %v850, 7
          %v852 = vsub.s32 0, %v851
          %v853 = vrot.slane %v638, %v852
          %v855 = vadd.f32 %v848, %v853
          %vm856 = vcmask 64512
          %v857 = vsel %vm856, %v855, -inf
          %858 = vmax.xlane.f32.xlu0 %v857
          %v859 = vpop.xlane.xlu0 %858
          %v860 = vsub.f32 %v855, %v859
          %v861 = vmul.f32 %v860, 1.442695
          %v862 = vpow.pop %v861
          %v863 = vsel %vm856, %v862, 0.0
          %864 = vadd.xlane.f32.xlu0 %v863
          %v865 = vpop.xlane.xlu0 %864
          %v866 = vrcp.pop %v865
          %v867 = vmul.f32 %v862, %v866
          %868 = vrot.lane.b32.xlu0 %v762, 64
          %v869 = vpop.permute.xlu0 %868
          %v872 = vsel %vm856, %v867, 0
          %874 = vmatprep.subr.mxu0 0.0
          %875 = vmatpush1.msra.mxu0 %v869
          %876 = vmatprep.subr.mxu0 0.0
          %877 = vmatpush1.msra.mxu0 0.0
          %878 = vmatprep.subr.mxu0 0.0
          %879 = vmatpush1.msra.mxu0 0.0
          %880 = vmatprep.subr.mxu0 0.0
          %881 = vmatpush1.msra.mxu0 0.0
          %882 = vmatprep.subr.mxu0 0.0
          %883 = vmatpush1.msra.mxu0 0.0
          %884 = vmatprep.subr.mxu0 0.0
          %885 = vmatpush1.msra.mxu0 0.0
          %886 = vmatprep.subr.mxu0 0.0
          %887 = vmatpush1.msra.mxu0 0.0
          %888 = vmatprep.subr.mxu0 0.0
          %889 = vmatpush1.msra.mxu0 0.0
          %890 = vmatprep.subr.mxu0 0.0
          %891 = vmatpush1.msra.mxu0 0.0
          %892 = vmatprep.subr.mxu0 0.0
          %893 = vmatpush1.msra.mxu0 0.0
          %894 = vmatprep.subr.mxu0 0.0
          %895 = vmatpush1.msra.mxu0 0.0
          %896 = vmatprep.subr.mxu0 0.0
          %897 = vmatpush1.msra.mxu0 0.0
          %898 = vmatprep.subr.mxu0 0.0
          %899 = vmatpush1.msra.mxu0 0.0
          %900 = vmatprep.subr.mxu0 0.0
          %901 = vmatpush1.msra.mxu0 0.0
          %902 = vmatprep.subr.mxu0 0.0
          %903 = vmatpush1.msra.mxu0 0.0
          %904 = vmatprep.subr.mxu0 0.0
          %905 = vmatpush1.msra.mxu0 0.0
          %906 = vmatprep.subr.mxu0 0.0
          %907 = vmatpush1.msra.mxu0 0.0
          %908 = vmatprep.subr.mxu0 0.0
          %909 = vmatpush1.msra.mxu0 0.0
          %910 = vmatprep.subr.mxu0 0.0
          %911 = vmatpush1.msra.mxu0 0.0
          %912 = vmatprep.subr.mxu0 0.0
          %913 = vmatpush1.msra.mxu0 0.0
          %914 = vmatprep.subr.mxu0 0.0
          %915 = vmatpush1.msra.mxu0 0.0
          %916 = vmatprep.subr.mxu0 0.0
          %917 = vmatpush1.msra.mxu0 0.0
          %918 = vmatprep.subr.mxu0 0.0
          %919 = vmatpush1.msra.mxu0 0.0
          %920 = vmatprep.subr.mxu0 0.0
          %921 = vmatpush1.msra.mxu0 0.0
          %922 = vmatprep.subr.mxu0 0.0
          %923 = vmatpush1.msra.mxu0 0.0
          %924 = vmatprep.subr.mxu0 0.0
          %925 = vmatpush1.msra.mxu0 0.0
          %926 = vmatprep.subr.mxu0 0.0
          %927 = vmatpush1.msra.mxu0 0.0
          %928 = vmatprep.subr.mxu0 0.0
          %929 = vmatpush1.msra.mxu0 0.0
          %930 = vmatprep.subr.mxu0 0.0
          %931 = vmatpush1.msra.mxu0 0.0
          %932 = vmatprep.subr.mxu0 0.0
          %933 = vmatpush1.msra.mxu0 0.0
          %934 = vmatprep.subr.mxu0 0.0
          %935 = vmatpush1.msra.mxu0 0.0
          %936 = vmatprep.subr.mxu0 0.0
          %937 = vmatpush1.msra.mxu0 0.0
          %938 = vmatprep.mubr.f32.mxu0 0.0
          %939 = vmatmul.mubr.f32.gmra.mrb[0].mxu0 %v872
          %v940 = vpop.f32.mrb[0].mxu0
          %v941 = vadd.f32 0.0, %v940
          %v942 = vpop.f32.mrb[0].mxu0
          %943 = vdwg.mxu0
          %944 = vrot.lane.b32.xlu0 %v762, 112
          %v945 = vpop.permute.xlu0 %944
          %946 = vrot.lane.b32.xlu0 %v762, 80
          %v947 = vpop.permute.xlu0 %946
          %v948 = vsel %vm773, %v945, 0
          %v950 = vsel %vm773, %v947, 0
          %952 = vmatprep.subr.mxu0 0.0
          %953 = vmatpush1.xpose.msra.mxu0 %v950
          %954 = vmatprep.subr.mxu0 0.0
          %955 = vmatpush1.xpose.msra.mxu0 0.0
          %956 = vmatprep.subr.mxu0 0.0
          %957 = vmatpush1.xpose.msra.mxu0 0.0
          %958 = vmatprep.subr.mxu0 0.0
          %959 = vmatpush1.xpose.msra.mxu0 0.0
          %960 = vmatprep.subr.mxu0 0.0
          %961 = vmatpush1.xpose.msra.mxu0 0.0
          %962 = vmatprep.subr.mxu0 0.0
          %963 = vmatpush1.xpose.msra.mxu0 0.0
          %964 = vmatprep.subr.mxu0 0.0
          %965 = vmatpush1.xpose.msra.mxu0 0.0
          %966 = vmatprep.subr.mxu0 0.0
          %967 = vmatpush1.xpose.msra.mxu0 0.0
          %968 = vmatprep.subr.mxu0 0.0
          %969 = vmatpush1.xpose.msra.mxu0 0.0
          %970 = vmatprep.subr.mxu0 0.0
          %971 = vmatpush1.xpose.msra.mxu0 0.0
          %972 = vmatprep.subr.mxu0 0.0
          %973 = vmatpush1.xpose.msra.mxu0 0.0
          %974 = vmatprep.subr.mxu0 0.0
          %975 = vmatpush1.xpose.msra.mxu0 0.0
          %976 = vmatprep.subr.mxu0 0.0
          %977 = vmatpush1.xpose.msra.mxu0 0.0
          %978 = vmatprep.subr.mxu0 0.0
          %979 = vmatpush1.xpose.msra.mxu0 0.0
          %980 = vmatprep.subr.mxu0 0.0
          %981 = vmatpush1.xpose.msra.mxu0 0.0
          %982 = vmatprep.subr.mxu0 0.0
          %983 = vmatpush1.xpose.msra.mxu0 0.0
          %984 = vmatprep.subr.mxu0 0.0
          %985 = vmatpush1.xpose.msra.mxu0 0.0
          %986 = vmatprep.subr.mxu0 0.0
          %987 = vmatpush1.xpose.msra.mxu0 0.0
          %988 = vmatprep.subr.mxu0 0.0
          %989 = vmatpush1.xpose.msra.mxu0 0.0
          %990 = vmatprep.subr.mxu0 0.0
          %991 = vmatpush1.xpose.msra.mxu0 0.0
          %992 = vmatprep.subr.mxu0 0.0
          %993 = vmatpush1.xpose.msra.mxu0 0.0
          %994 = vmatprep.subr.mxu0 0.0
          %995 = vmatpush1.xpose.msra.mxu0 0.0
          %996 = vmatprep.subr.mxu0 0.0
          %997 = vmatpush1.xpose.msra.mxu0 0.0
          %998 = vmatprep.subr.mxu0 0.0
          %999 = vmatpush1.xpose.msra.mxu0 0.0
          %1000 = vmatprep.subr.mxu0 0.0
          %1001 = vmatpush1.xpose.msra.mxu0 0.0
          %1002 = vmatprep.subr.mxu0 0.0
          %1003 = vmatpush1.xpose.msra.mxu0 0.0
          %1004 = vmatprep.subr.mxu0 0.0
          %1005 = vmatpush1.xpose.msra.mxu0 0.0
          %1006 = vmatprep.subr.mxu0 0.0
          %1007 = vmatpush1.xpose.msra.mxu0 0.0
          %1008 = vmatprep.subr.mxu0 0.0
          %1009 = vmatpush1.xpose.msra.mxu0 0.0
          %1010 = vmatprep.subr.mxu0 0.0
          %1011 = vmatpush1.xpose.msra.mxu0 0.0
          %1012 = vmatprep.subr.mxu0 0.0
          %1013 = vmatpush1.xpose.msra.mxu0 0.0
          %1014 = vmatprep.subr.mxu0 0.0
          %1015 = vmatpush1.xpose.msra.mxu0 0.0
          %1016 = vmatprep.mubr.f32.mxu0 0.0
          %1017 = vmatmul.mubr.f32.gmra.mrb[0].mxu0 %v948
          %v1018 = vpop.f32.mrb[0].mxu0
          %v1019 = vadd.f32 0.0, %v1018
          %v1020 = vpop.f32.mrb[0].mxu0
          %1021 = vdwg.mxu0
          %v1022 = vmul.f32 %v1019, 0.25
          %v1023 = vadd.f32 %v1022, %v853
          %v1024 = vsel %vm856, %v1023, -inf
          %1025 = vmax.xlane.f32.xlu0 %v1024
          %v1026 = vpop.xlane.xlu0 %1025
          %v1027 = vsub.f32 %v1023, %v1026
          %v1028 = vmul.f32 %v1027, 1.442695
          %v1029 = vpow.pop %v1028
          %v1030 = vsel %vm856, %v1029, 0.0
          %1031 = vadd.xlane.f32.xlu0 %v1030
          %v1032 = vpop.xlane.xlu0 %1031
          %v1033 = vrcp.pop %v1032
          %v1034 = vmul.f32 %v1029, %v1033
          %1035 = vrot.lane.b32.xlu0 %v762, 48
          %v1036 = vpop.permute.xlu0 %1035
          %v1039 = vsel %vm856, %v1034, 0
          %1041 = vmatprep.subr.mxu0 0.0
          %1042 = vmatpush1.msra.mxu0 %v1036
          %1043 = vmatprep.subr.mxu0 0.0
          %1044 = vmatpush1.msra.mxu0 0.0
          %1045 = vmatprep.subr.mxu0 0.0
          %1046 = vmatpush1.msra.mxu0 0.0
          %1047 = vmatprep.subr.mxu0 0.0
          %1048 = vmatpush1.msra.mxu0 0.0
          %1049 = vmatprep.subr.mxu0 0.0
          %1050 = vmatpush1.msra.mxu0 0.0
          %1051 = vmatprep.subr.mxu0 0.0
          %1052 = vmatpush1.msra.mxu0 0.0
          %1053 = vmatprep.subr.mxu0 0.0
          %1054 = vmatpush1.msra.mxu0 0.0
          %1055 = vmatprep.subr.mxu0 0.0
          %1056 = vmatpush1.msra.mxu0 0.0
          %1057 = vmatprep.subr.mxu0 0.0
          %1058 = vmatpush1.msra.mxu0 0.0
          %1059 = vmatprep.subr.mxu0 0.0
          %1060 = vmatpush1.msra.mxu0 0.0
          %1061 = vmatprep.subr.mxu0 0.0
          %1062 = vmatpush1.msra.mxu0 0.0
          %1063 = vmatprep.subr.mxu0 0.0
          %1064 = vmatpush1.msra.mxu0 0.0
          %1065 = vmatprep.subr.mxu0 0.0
          %1066 = vmatpush1.msra.mxu0 0.0
          %1067 = vmatprep.subr.mxu0 0.0
          %1068 = vmatpush1.msra.mxu0 0.0
          %1069 = vmatprep.subr.mxu0 0.0
          %1070 = vmatpush1.msra.mxu0 0.0
          %1071 = vmatprep.subr.mxu0 0.0
          %1072 = vmatpush1.msra.mxu0 0.0
          %1073 = vmatprep.subr.mxu0 0.0
          %1074 = vmatpush1.msra.mxu0 0.0
          %1075 = vmatprep.subr.mxu0 0.0
          %1076 = vmatpush1.msra.mxu0 0.0
          %1077 = vmatprep.subr.mxu0 0.0
          %1078 = vmatpush1.msra.mxu0 0.0
          %1079 = vmatprep.subr.mxu0 0.0
          %1080 = vmatpush1.msra.mxu0 0.0
          %1081 = vmatprep.subr.mxu0 0.0
          %1082 = vmatpush1.msra.mxu0 0.0
          %1083 = vmatprep.subr.mxu0 0.0
          %1084 = vmatpush1.msra.mxu0 0.0
          %1085 = vmatprep.subr.mxu0 0.0
          %1086 = vmatpush1.msra.mxu0 0.0
          %1087 = vmatprep.subr.mxu0 0.0
          %1088 = vmatpush1.msra.mxu0 0.0
          %1089 = vmatprep.subr.mxu0 0.0
          %1090 = vmatpush1.msra.mxu0 0.0
          %1091 = vmatprep.subr.mxu0 0.0
          %1092 = vmatpush1.msra.mxu0 0.0
          %1093 = vmatprep.subr.mxu0 0.0
          %1094 = vmatpush1.msra.mxu0 0.0
          %1095 = vmatprep.subr.mxu0 0.0
          %1096 = vmatpush1.msra.mxu0 0.0
          %1097 = vmatprep.subr.mxu0 0.0
          %1098 = vmatpush1.msra.mxu0 0.0
          %1099 = vmatprep.subr.mxu0 0.0
          %1100 = vmatpush1.msra.mxu0 0.0
          %1101 = vmatprep.subr.mxu0 0.0
          %1102 = vmatpush1.msra.mxu0 0.0
          %1103 = vmatprep.subr.mxu0 0.0
          %1104 = vmatpush1.msra.mxu0 0.0
          %1105 = vmatprep.mubr.f32.mxu0 0.0
          %1106 = vmatmul.mubr.f32.gmra.mrb[0].mxu0 %v1039
          %v1107 = vpop.f32.mrb[0].mxu0
          %v1108 = vadd.f32 0.0, %v1107
          %v1109 = vpop.f32.mrb[0].mxu0
          %1110 = vdwg.mxu0
          %v1112 = vsel %vm773, %v1108, 0
          %1114 = vmatprep.subr.mxu0 0.0
          %1115 = vmatpush1.msra.mxu0 %v768
          %1116 = vmatprep.subr.mxu0 0.0
          %1117 = vmatpush1.msra.mxu0 %v769
          %1118 = vmatprep.subr.mxu0 0.0
          %1119 = vmatpush1.msra.mxu0 0.0
          %1120 = vmatprep.subr.mxu0 0.0
          %1121 = vmatpush1.msra.mxu0 0.0
          %1122 = vmatprep.subr.mxu0 0.0
          %1123 = vmatpush1.msra.mxu0 0.0
          %1124 = vmatprep.subr.mxu0 0.0
          %1125 = vmatpush1.msra.mxu0 0.0
          %1126 = vmatprep.subr.mxu0 0.0
          %1127 = vmatpush1.msra.mxu0 0.0
          %1128 = vmatprep.subr.mxu0 0.0
          %1129 = vmatpush1.msra.mxu0 0.0
          %1130 = vmatprep.subr.mxu0 0.0
          %1131 = vmatpush1.msra.mxu0 0.0
          %1132 = vmatprep.subr.mxu0 0.0
          %1133 = vmatpush1.msra.mxu0 0.0
          %1134 = vmatprep.subr.mxu0 0.0
          %1135 = vmatpush1.msra.mxu0 0.0
          %1136 = vmatprep.subr.mxu0 0.0
          %1137 = vmatpush1.msra.mxu0 0.0
          %1138 = vmatprep.subr.mxu0 0.0
          %1139 = vmatpush1.msra.mxu0 0.0
          %1140 = vmatprep.subr.mxu0 0.0
          %1141 = vmatpush1.msra.mxu0 0.0
          %1142 = vmatprep.subr.mxu0 0.0
          %1143 = vmatpush1.msra.mxu0 0.0
          %1144 = vmatprep.subr.mxu0 0.0
          %1145 = vmatpush1.msra.mxu0 0.0
          %1146 = vmatprep.subr.mxu0 0.0
          %1147 = vmatpush1.msra.mxu0 0.0
          %1148 = vmatprep.subr.mxu0 0.0
          %1149 = vmatpush1.msra.mxu0 0.0
          %1150 = vmatprep.subr.mxu0 0.0
          %1151 = vmatpush1.msra.mxu0 0.0
          %1152 = vmatprep.subr.mxu0 0.0
          %1153 = vmatpush1.msra.mxu0 0.0
          %1154 = vmatprep.subr.mxu0 0.0
          %1155 = vmatpush1.msra.mxu0 0.0
          %1156 = vmatprep.subr.mxu0 0.0
          %1157 = vmatpush1.msra.mxu0 0.0
          %1158 = vmatprep.subr.mxu0 0.0
          %1159 = vmatpush1.msra.mxu0 0.0
          %1160 = vmatprep.subr.mxu0 0.0
          %1161 = vmatpush1.msra.mxu0 0.0
          %1162 = vmatprep.subr.mxu0 0.0
          %1163 = vmatpush1.msra.mxu0 0.0
          %1164 = vmatprep.subr.mxu0 0.0
          %1165 = vmatpush1.msra.mxu0 0.0
          %1166 = vmatprep.subr.mxu0 0.0
          %1167 = vmatpush1.msra.mxu0 0.0
          %1168 = vmatprep.subr.mxu0 0.0
          %1169 = vmatpush1.msra.mxu0 0.0
          %1170 = vmatprep.subr.mxu0 0.0
          %1171 = vmatpush1.msra.mxu0 0.0
          %1172 = vmatprep.subr.mxu0 0.0
          %1173 = vmatpush1.msra.mxu0 0.0
          %1174 = vmatprep.subr.mxu0 0.0
          %1175 = vmatpush1.msra.mxu0 0.0
          %1176 = vmatprep.subr.mxu0 0.0
          %1177 = vmatpush1.msra.mxu0 0.0
          %1178 = vmatprep.mubr.f32.mxu0 0.0
          %1179 = vmatmul.mubr.f32.gmra.mrb[0].mxu0 %v1112
          %v1180 = vpop.f32.mrb[0].mxu0
          %v1181 = vadd.f32 0.0, %v1180
          %v1182 = vpop.f32.mrb[0].mxu0
          %1183 = vdwg.mxu0
          %v1185 = vsel %vm773, %v941, 0
          %1187 = vmatprep.subr.mxu0 0.0
          %1188 = vmatpush1.msra.mxu0 %v766
          %1189 = vmatprep.subr.mxu0 0.0
          %1190 = vmatpush1.msra.mxu0 %v767
          %1191 = vmatprep.subr.mxu0 0.0
          %1192 = vmatpush1.msra.mxu0 0.0
          %1193 = vmatprep.subr.mxu0 0.0
          %1194 = vmatpush1.msra.mxu0 0.0
          %1195 = vmatprep.subr.mxu0 0.0
          %1196 = vmatpush1.msra.mxu0 0.0
          %1197 = vmatprep.subr.mxu0 0.0
          %1198 = vmatpush1.msra.mxu0 0.0
          %1199 = vmatprep.subr.mxu0 0.0
          %1200 = vmatpush1.msra.mxu0 0.0
          %1201 = vmatprep.subr.mxu0 0.0
          %1202 = vmatpush1.msra.mxu0 0.0
          %1203 = vmatprep.subr.mxu0 0.0
          %1204 = vmatpush1.msra.mxu0 0.0
          %1205 = vmatprep.subr.mxu0 0.0
          %1206 = vmatpush1.msra.mxu0 0.0
          %1207 = vmatprep.subr.mxu0 0.0
          %1208 = vmatpush1.msra.mxu0 0.0
          %1209 = vmatprep.subr.mxu0 0.0
          %1210 = vmatpush1.msra.mxu0 0.0
          %1211 = vmatprep.subr.mxu0 0.0
          %1212 = vmatpush1.msra.mxu0 0.0
          %1213 = vmatprep.subr.mxu0 0.0
          %1214 = vmatpush1.msra.mxu0 0.0
          %1215 = vmatprep.subr.mxu0 0.0
          %1216 = vmatpush1.msra.mxu0 0.0
          %1217 = vmatprep.subr.mxu0 0.0
          %1218 = vmatpush1.msra.mxu0 0.0
          %1219 = vmatprep.subr.mxu0 0.0
          %1220 = vmatpush1.msra.mxu0 0.0
          %1221 = vmatprep.subr.mxu0 0.0
          %1222 = vmatpush1.msra.mxu0 0.0
          %1223 = vmatprep.subr.mxu0 0.0
          %1224 = vmatpush1.msra.mxu0 0.0
          %1225 = vmatprep.subr.mxu0 0.0
          %1226 = vmatpush1.msra.mxu0 0.0
          %1227 = vmatprep.subr.mxu0 0.0
          %1228 = vmatpush1.msra.mxu0 0.0
          %1229 = vmatprep.subr.mxu0 0.0
          %1230 = vmatpush1.msra.mxu0 0.0
          %1231 = vmatprep.subr.mxu0 0.0
          %1232 = vmatpush1.msra.mxu0 0.0
          %1233 = vmatprep.subr.mxu0 0.0
          %1234 = vmatpush1.msra.mxu0 0.0
          %1235 = vmatprep.subr.mxu0 0.0
          %1236 = vmatpush1.msra.mxu0 0.0
          %1237 = vmatprep.subr.mxu0 0.0
          %1238 = vmatpush1.msra.mxu0 0.0
          %1239 = vmatprep.subr.mxu0 0.0
          %1240 = vmatpush1.msra.mxu0 0.0
          %1241 = vmatprep.subr.mxu0 0.0
          %1242 = vmatpush1.msra.mxu0 0.0
          %1243 = vmatprep.subr.mxu0 0.0
          %1244 = vmatpush1.msra.mxu0 0.0
          %1245 = vmatprep.subr.mxu0 0.0
          %1246 = vmatpush1.msra.mxu0 0.0
          %1247 = vmatprep.subr.mxu0 0.0
          %1248 = vmatpush1.msra.mxu0 0.0
          %1249 = vmatprep.subr.mxu0 0.0
          %1250 = vmatpush1.msra.mxu0 0.0
          %1251 = vmatprep.mubr.f32.mxu0 0.0
          %1252 = vmatmul.mubr.f32.gmra.mrb[0].mxu0 %v1185
          %v1253 = vpop.f32.mrb[0].mxu0
          %v1254 = vadd.f32 %v1181, %v1253
          %v1255 = vpop.f32.mrb[0].mxu0
          %1256 = vdwg.mxu0
          %s1257 = scalar_lea.vmem %s7, %s672
          %v1258 = vld [vmem:[%s1257] sm:$0x1]
          %v1260 = vlaneseq
          %v1261 = vshrl.u32 %v1260, 7
          %v1262 = vsub.s32 0, %v1261
          %v1263 = vrot.slane %v1258, %v1262
          %v1265 = vadd.f32 %v1254, %v1263
          %v1266 = vadd.f32 %v677, %v1265
          %s1267 = scalar_lea.vmem %s8, %s672
          %v1268 = vld [vmem:[%s1267] sm:$0x1]
          %s1269 = scalar_lea.vmem %s9, %s672
          %v1270 = vld [vmem:[%s1269] sm:$0x1]
          %v1271 = vsel %vm642, %v1266, 0.0
          %1272 = vadd.xlane.f32.xlu0 %v1271
          %v1273 = vpop.xlane.xlu0 %1272
          %v1274 = vmul.f32 %v1273, %v646
          %v1275 = vsub.f32 %v1266, %v1274
          %v1276 = vmul.f32 %v1275, %v1275
          %v1277 = vsel %vm642, %v1276, 0.0
          %1278 = vadd.xlane.f32.xlu0 %v1277
          %v1279 = vpop.xlane.xlu0 %1278
          %v1280 = vmul.f32 %v1279, %v646
          %v1281 = vadd.f32 %v1280, 1e-12
          %v1282 = vrsqrt.pop %v1281
          %v1283 = vmul.f32 %v1275, %v1282
          %v1285 = vlaneseq
          %v1286 = vshrl.u32 %v1285, 7
          %v1287 = vsub.s32 0, %v1286
          %v1288 = vrot.slane %v1268, %v1287
          %v1290 = vmul.f32 %v1283, %v1288
          %v1292 = vlaneseq
          %v1293 = vshrl.u32 %v1292, 7
          %v1294 = vsub.s32 0, %v1293
          %v1295 = vrot.slane %v1270, %v1294
          %v1297 = vadd.f32 %v1290, %v1295
          %s1298 = scalar_lea.vmem %s10, %s678
          %v1299 = vld [vmem:[%s1298] sm:$0xff]
          %v1300 = vld [vmem:[%s1298 + $0x8] sm:$0xff]
          %v1301 = vld [vmem:[%s1298 + $0x10] sm:$0xff]
          %v1302 = vld [vmem:[%s1298 + $0x18] sm:$0xff]
          %s1303 = scalar_lea.vmem %s11, %s672
          %v1304 = vld [vmem:[%s1303] sm:$0x1]
          %v1306 = vlaneseq
          %v1307 = vshrl.u32 %v1306, 7
          %v1308 = vsub.s32 0, %v1307
          %v1309 = vrot.slane %v1304, %v1308
          %v1312 = vsel %vm642, %v1297, 0
          %1314 = vmatprep.subr.mxu0 0.0
          %1315 = vmatpush1.msra.mxu0 %v1299
          %1316 = vmatprep.subr.mxu0 0.0
          %1317 = vmatpush1.msra.mxu0 %v1300
          %1318 = vmatprep.subr.mxu0 0.0
          %1319 = vmatpush1.msra.mxu0 %v1301
          %1320 = vmatprep.subr.mxu0 0.0
          %1321 = vmatpush1.msra.mxu0 %v1302
          %1322 = vmatprep.subr.mxu0 0.0
          %1323 = vmatpush1.msra.mxu0 0.0
          %1324 = vmatprep.subr.mxu0 0.0
          %1325 = vmatpush1.msra.mxu0 0.0
          %1326 = vmatprep.subr.mxu0 0.0
          %1327 = vmatpush1.msra.mxu0 0.0
          %1328 = vmatprep.subr.mxu0 0.0
          %1329 = vmatpush1.msra.mxu0 0.0
          %1330 = vmatprep.subr.mxu0 0.0
          %1331 = vmatpush1.msra.mxu0 0.0
          %1332 = vmatprep.subr.mxu0 0.0
          %1333 = vmatpush1.msra.mxu0 0.0
          %1334 = vmatprep.subr.mxu0 0.0
          %1335 = vmatpush1.msra.mxu0 0.0
          %1336 = vmatprep.subr.mxu0 0.0
          %1337 = vmatpush1.msra.mxu0 0.0
          %1338 = vmatprep.subr.mxu0 0.0
          %1339 = vmatpush1.msra.mxu0 0.0
          %1340 = vmatprep.subr.mxu0 0.0
          %1341 = vmatpush1.msra.mxu0 0.0
          %1342 = vmatprep.subr.mxu0 0.0
          %1343 = vmatpush1.msra.mxu0 0.0
          %1344 = vmatprep.subr.mxu0 0.0
          %1345 = vmatpush1.msra.mxu0 0.0
          %1346 = vmatprep.subr.mxu0 0.0
          %1347 = vmatpush1.msra.mxu0 0.0
          %1348 = vmatprep.subr.mxu0 0.0
          %1349 = vmatpush1.msra.mxu0 0.0
          %1350 = vmatprep.subr.mxu0 0.0
          %1351 = vmatpush1.msra.mxu0 0.0
          %1352 = vmatprep.subr.mxu0 0.0
          %1353 = vmatpush1.msra.mxu0 0.0
          %1354 = vmatprep.subr.mxu0 0.0
          %1355 = vmatpush1.msra.mxu0 0.0
          %1356 = vmatprep.subr.mxu0 0.0
          %1357 = vmatpush1.msra.mxu0 0.0
          %1358 = vmatprep.subr.mxu0 0.0
          %1359 = vmatpush1.msra.mxu0 0.0
          %1360 = vmatprep.subr.mxu0 0.0
          %1361 = vmatpush1.msra.mxu0 0.0
          %1362 = vmatprep.subr.mxu0 0.0
          %1363 = vmatpush1.msra.mxu0 0.0
          %1364 = vmatprep.subr.mxu0 0.0
          %1365 = vmatpush1.msra.mxu0 0.0
          %1366 = vmatprep.subr.mxu0 0.0
          %1367 = vmatpush1.msra.mxu0 0.0
          %1368 = vmatprep.subr.mxu0 0.0
          %1369 = vmatpush1.msra.mxu0 0.0
          %1370 = vmatprep.subr.mxu0 0.0
          %1371 = vmatpush1.msra.mxu0 0.0
          %1372 = vmatprep.subr.mxu0 0.0
          %1373 = vmatpush1.msra.mxu0 0.0
          %1374 = vmatprep.subr.mxu0 0.0
          %1375 = vmatpush1.msra.mxu0 0.0
          %1376 = vmatprep.subr.mxu0 0.0
          %1377 = vmatpush1.msra.mxu0 0.0
          %1378 = vmatprep.mubr.f32.mxu0 0.0
          %1379 = vmatmul.mubr.f32.gmra.mrb[0].mxu0 %v1312
          %v1380 = vpop.f32.mrb[0].mxu0
          %v1381 = vadd.f32 %v1309, %v1380
          %v1382 = vpop.f32.mrb[0].mxu0
          %1383 = vdwg.mxu0
          %v1384 = vmul.f32 %v1381, 0.5
          %v1385 = vmul.f32 %v1381, 0.044715
          %v1386 = vmul.f32 %v1385, %v1381
          %v1387 = vmul.f32 %v1386, %v1381
          %v1388 = vadd.f32 %v1381, %v1387
          %v1389 = vmul.f32 %v1388, 0.7978846
          %v1390 = vtanh.pop %v1389
          %v1391 = vadd.f32 %v1390, 1.0
          %v1392 = vmul.f32 %v1384, %v1391
          %s1393 = smul.u32 %s672, 64
          %s1394 = scalar_lea.vmem %s12, %s1393
          %v1395 = vld [vmem:[%s1394] sm:$0xff]
          %v1396 = vld [vmem:[%s1394 + $0x8] sm:$0xff]
          %v1397 = vld [vmem:[%s1394 + $0x10] sm:$0xff]
          %v1398 = vld [vmem:[%s1394 + $0x18] sm:$0xff]
          %v1399 = vld [vmem:[%s1394 + $0x20] sm:$0xff]
          %v1400 = vld [vmem:[%s1394 + $0x28] sm:$0xff]
          %v1401 = vld [vmem:[%s1394 + $0x30] sm:$0xff]
          %v1402 = vld [vmem:[%s1394 + $0x38] sm:$0xff]
          %s1403 = scalar_lea.vmem %s13, %s672
          %v1404 = vld [vmem:[%s1403] sm:$0x1]
          %v1406 = vlaneseq
          %v1407 = vshrl.u32 %v1406, 7
          %v1408 = vsub.s32 0, %v1407
          %v1409 = vrot.slane %v1404, %v1408
          %vm1411 = vcmask 523264
          %v1413 = vsel %vm1411, %v1392, 0
          %1415 = vmatprep.subr.mxu0 0.0
          %1416 = vmatpush1.msra.mxu0 %v1395
          %1417 = vmatprep.subr.mxu0 0.0
          %1418 = vmatpush1.msra.mxu0 %v1396
          %1419 = vmatprep.subr.mxu0 0.0
          %1420 = vmatpush1.msra.mxu0 %v1397
          %1421 = vmatprep.subr.mxu0 0.0
          %1422 = vmatpush1.msra.mxu0 %v1398
          %1423 = vmatprep.subr.mxu0 0.0
          %1424 = vmatpush1.msra.mxu0 %v1399
          %1425 = vmatprep.subr.mxu0 0.0
          %1426 = vmatpush1.msra.mxu0 %v1400
          %1427 = vmatprep.subr.mxu0 0.0
          %1428 = vmatpush1.msra.mxu0 %v1401
          %1429 = vmatprep.subr.mxu0 0.0
          %1430 = vmatpush1.msra.mxu0 %v1402
          %1431 = vmatprep.subr.mxu0 0.0
          %1432 = vmatpush1.msra.mxu0 0.0
          %1433 = vmatprep.subr.mxu0 0.0
          %1434 = vmatpush1.msra.mxu0 0.0
          %1435 = vmatprep.subr.mxu0 0.0
          %1436 = vmatpush1.msra.mxu0 0.0
          %1437 = vmatprep.subr.mxu0 0.0
          %1438 = vmatpush1.msra.mxu0 0.0
          %1439 = vmatprep.subr.mxu0 0.0
          %1440 = vmatpush1.msra.mxu0 0.0
          %1441 = vmatprep.subr.mxu0 0.0
          %1442 = vmatpush1.msra.mxu0 0.0
          %1443 = vmatprep.subr.mxu0 0.0
          %1444 = vmatpush1.msra.mxu0 0.0
          %1445 = vmatprep.subr.mxu0 0.0
          %1446 = vmatpush1.msra.mxu0 0.0
          %1447 = vmatprep.subr.mxu0 0.0
          %1448 = vmatpush1.msra.mxu0 0.0
          %1449 = vmatprep.subr.mxu0 0.0
          %1450 = vmatpush1.msra.mxu0 0.0
          %1451 = vmatprep.subr.mxu0 0.0
          %1452 = vmatpush1.msra.mxu0 0.0
          %1453 = vmatprep.subr.mxu0 0.0
          %1454 = vmatpush1.msra.mxu0 0.0
          %1455 = vmatprep.subr.mxu0 0.0
          %1456 = vmatpush1.msra.mxu0 0.0
          %1457 = vmatprep.subr.mxu0 0.0
          %1458 = vmatpush1.msra.mxu0 0.0
          %1459 = vmatprep.subr.mxu0 0.0
          %1460 = vmatpush1.msra.mxu0 0.0
          %1461 = vmatprep.subr.mxu0 0.0
          %1462 = vmatpush1.msra.mxu0 0.0
          %1463 = vmatprep.subr.mxu0 0.0
          %1464 = vmatpush1.msra.mxu0 0.0
          %1465 = vmatprep.subr.mxu0 0.0
          %1466 = vmatpush1.msra.mxu0 0.0
          %1467 = vmatprep.subr.mxu0 0.0
          %1468 = vmatpush1.msra.mxu0 0.0
          %1469 = vmatprep.subr.mxu0 0.0
          %1470 = vmatpush1.msra.mxu0 0.0
          %1471 = vmatprep.subr.mxu0 0.0
          %1472 = vmatpush1.msra.mxu0 0.0
          %1473 = vmatprep.subr.mxu0 0.0
          %1474 = vmatpush1.msra.mxu0 0.0
          %1475 = vmatprep.subr.mxu0 0.0
          %1476 = vmatpush1.msra.mxu0 0.0
          %1477 = vmatprep.subr.mxu0 0.0
          %1478 = vmatpush1.msra.mxu0 0.0
          %1479 = vmatprep.mubr.f32.mxu0 0.0
          %1480 = vmatmul.mubr.f32.gmra.mrb[0].mxu0 %v1413
          %v1481 = vpop.f32.mrb[0].mxu0
          %v1482 = vadd.f32 %v1409, %v1481
          %v1483 = vpop.f32.mrb[0].mxu0
          %1484 = vdwg.mxu0
          %v1485 = vadd.f32 %v1297, %v1482
          %s1486 = scalar_lea.vmem %s14, %s672
          %v1487 = vld [vmem:[%s1486] sm:$0x1]
          %s1488 = scalar_lea.vmem %s15, %s672
          %v1489 = vld [vmem:[%s1488] sm:$0x1]
          %v1490 = vsel %vm642, %v1485, 0.0
          %1491 = vadd.xlane.f32.xlu0 %v1490
          %v1492 = vpop.xlane.xlu0 %1491
          %v1493 = vmul.f32 %v1492, %v646
          %v1494 = vsub.f32 %v1485, %v1493
          %v1495 = vmul.f32 %v1494, %v1494
          %v1496 = vsel %vm642, %v1495, 0.0
          %1497 = vadd.xlane.f32.xlu0 %v1496
          %v1498 = vpop.xlane.xlu0 %1497
          %v1499 = vmul.f32 %v1498, %v646
          %v1500 = vadd.f32 %v1499, 1e-12
          %v1501 = vrsqrt.pop %v1500
          %v1502 = vmul.f32 %v1494, %v1501
          %v1504 = vlaneseq
          %v1505 = vshrl.u32 %v1504, 7
          %v1506 = vsub.s32 0, %v1505
          %v1507 = vrot.slane %v1487, %v1506
          %v1509 = vmul.f32 %v1502, %v1507
          %v1511 = vlaneseq
          %v1512 = vshrl.u32 %v1511, 7
          %v1513 = vsub.s32 0, %v1512
          %v1514 = vrot.slane %v1489, %v1513
          %v1516 = vadd.f32 %v1509, %v1514
        $region105: #{mcc_classifier_forward.1} parent=99 // loop_footer
          %s676 = sadd.s32 1, %s672
        $region106: #{mcc_classifier_forward.1} parent=99 // loop_footer_branch
          %671 = sbr.rel target = $region102
        $region107: #{mcc_classifier_forward.1} parent=99 // loop_exit
          _
        %v1517 = vld [vmem:[%s16] sm:$0xff]
        %v1518 = vld [vmem:[%s16 + $0x8] sm:$0xff]
        %v1519 = vld [vmem:[%s16 + $0x10] sm:$0xff]
        %v1520 = vld [vmem:[%s16 + $0x18] sm:$0xff]
        %v1521 = vld [vmem:[%s17] sm:$0x1]
        %v1523 = vsel %vm642, %v677, 0
        %1525 = vmatprep.subr.mxu0 0.0
        %1526 = vmatpush1.msra.mxu0 %v1517
        %1527 = vmatprep.subr.mxu0 0.0
        %1528 = vmatpush1.msra.mxu0 %v1518
        %1529 = vmatprep.subr.mxu0 0.0
        %1530 = vmatpush1.msra.mxu0 %v1519
        %1531 = vmatprep.subr.mxu0 0.0
        %1532 = vmatpush1.msra.mxu0 %v1520
        %1533 = vmatprep.subr.mxu0 0.0
        %1534 = vmatpush1.msra.mxu0 0.0
        %1535 = vmatprep.subr.mxu0 0.0
        %1536 = vmatpush1.msra.mxu0 0.0
        %1537 = vmatprep.subr.mxu0 0.0
        %1538 = vmatpush1.msra.mxu0 0.0
        %1539 = vmatprep.subr.mxu0 0.0
        %1540 = vmatpush1.msra.mxu0 0.0
        %1541 = vmatprep.subr.mxu0 0.0
        %1542 = vmatpush1.msra.mxu0 0.0
        %1543 = vmatprep.subr.mxu0 0.0
        %1544 = vmatpush1.msra.mxu0 0.0
        %1545 = vmatprep.subr.mxu0 0.0
        %1546 = vmatpush1.msra.mxu0 0.0
        %1547 = vmatprep.subr.mxu0 0.0
        %1548 = vmatpush1.msra.mxu0 0.0
        %1549 = vmatprep.subr.mxu0 0.0
        %1550 = vmatpush1.msra.mxu0 0.0
        %1551 = vmatprep.subr.mxu0 0.0
        %1552 = vmatpush1.msra.mxu0 0.0
        %1553 = vmatprep.subr.mxu0 0.0
        %1554 = vmatpush1.msra.mxu0 0.0
        %1555 = vmatprep.subr.mxu0 0.0
        %1556 = vmatpush1.msra.mxu0 0.0
        %1557 = vmatprep.subr.mxu0 0.0
        %1558 = vmatpush1.msra.mxu0 0.0
        %1559 = vmatprep.subr.mxu0 0.0
        %1560 = vmatpush1.msra.mxu0 0.0
        %1561 = vmatprep.subr.mxu0 0.0
        %1562 = vmatpush1.msra.mxu0 0.0
        %1563 = vmatprep.subr.mxu0 0.0
        %1564 = vmatpush1.msra.mxu0 0.0
        %1565 = vmatprep.subr.mxu0 0.0
        %1566 = vmatpush1.msra.mxu0 0.0
        %1567 = vmatprep.subr.mxu0 0.0
        %1568 = vmatpush1.msra.mxu0 0.0
        %1569 = vmatprep.subr.mxu0 0.0
        %1570 = vmatpush1.msra.mxu0 0.0
        %1571 = vmatprep.subr.mxu0 0.0
        %1572 = vmatpush1.msra.mxu0 0.0
        %1573 = vmatprep.subr.mxu0 0.0
        %1574 = vmatpush1.msra.mxu0 0.0
        %1575 = vmatprep.subr.mxu0 0.0
        %1576 = vmatpush1.msra.mxu0 0.0
        %1577 = vmatprep.subr.mxu0 0.0
        %1578 = vmatpush1.msra.mxu0 0.0
        %1579 = vmatprep.subr.mxu0 0.0
        %1580 = vmatpush1.msra.mxu0 0.0
        %1581 = vmatprep.subr.mxu0 0.0
        %1582 = vmatpush1.msra.mxu0 0.0
        %1583 = vmatprep.subr.mxu0 0.0
        %1584 = vmatpush1.msra.mxu0 0.0
        %1585 = vmatprep.subr.mxu0 0.0
        %1586 = vmatpush1.msra.mxu0 0.0
        %1587 = vmatprep.subr.mxu0 0.0
        %1588 = vmatpush1.msra.mxu0 0.0
        %1589 = vmatprep.mubr.f32.mxu0 0.0
        %1590 = vmatmul.mubr.f32.gmra.mrb[0].mxu0 %v1523
        %v1591 = vpop.f32.mrb[0].mxu0
        %v1592 = vadd.f32 %v1521, %v1591
        %v1593 = vpop.f32.mrb[0].mxu0
        %1594 = vdwg.mxu0
        %v1595 = vtanh.pop %v1592
        %v1596 = vld [vmem:[%s18] sm:$0xff]
        %v1597 = vld [vmem:[%s18 + $0x8] sm:$0xff]
        %v1598 = vld [vmem:[%s18 + $0x10] sm:$0xff]
        %v1599 = vld [vmem:[%s18 + $0x18] sm:$0xff]
        %v1600 = vld [vmem:[%s19] sm:$0x1]
        %v1602 = vsel %vm642, %v1595, 0
        %1604 = vmatprep.subr.mxu0 0.0
        %1605 = vmatpush1.msra.mxu0 %v1596
        %1606 = vmatprep.subr.mxu0 0.0
        %1607 = vmatpush1.msra.mxu0 %v1597
        %1608 = vmatprep.subr.mxu0 0.0
        %1609 = vmatpush1.msra.mxu0 %v1598
        %1610 = vmatprep.subr.mxu0 0.0
        %1611 = vmatpush1.msra.mxu0 %v1599
        %1612 = vmatprep.subr.mxu0 0.0
        %1613 = vmatpush1.msra.mxu0 0.0
        %1614 = vmatprep.subr.mxu0 0.0
        %1615 = vmatpush1.msra.mxu0 0.0
        %1616 = vmatprep.subr.mxu0 0.0
        %1617 = vmatpush1.msra.mxu0 0.0
        %1618 = vmatprep.subr.mxu0 0.0
        %1619 = vmatpush1.msra.mxu0 0.0
        %1620 = vmatprep.subr.mxu0 0.0
        %1621 = vmatpush1.msra.mxu0 0.0
        %1622 = vmatprep.subr.mxu0 0.0
        %1623 = vmatpush1.msra.mxu0 0.0
        %1624 = vmatprep.subr.mxu0 0.0
        %1625 = vmatpush1.msra.mxu0 0.0
        %1626 = vmatprep.subr.mxu0 0.0
        %1627 = vmatpush1.msra.mxu0 0.0
        %1628 = vmatprep.subr.mxu0 0.0
        %1629 = vmatpush1.msra.mxu0 0.0
        %1630 = vmatprep.subr.mxu0 0.0
        %1631 = vmatpush1.msra.mxu0 0.0
        %1632 = vmatprep.subr.mxu0 0.0
        %1633 = vmatpush1.msra.mxu0 0.0
        %1634 = vmatprep.subr.mxu0 0.0
        %1635 = vmatpush1.msra.mxu0 0.0
        %1636 = vmatprep.subr.mxu0 0.0
        %1637 = vmatpush1.msra.mxu0 0.0
        %1638 = vmatprep.subr.mxu0 0.0
        %1639 = vmatpush1.msra.mxu0 0.0
        %1640 = vmatprep.subr.mxu0 0.0
        %1641 = vmatpush1.msra.mxu0 0.0
        %1642 = vmatprep.subr.mxu0 0.0
        %1643 = vmatpush1.msra.mxu0 0.0
        %1644 = vmatprep.subr.mxu0 0.0
        %1645 = vmatpush1.msra.mxu0 0.0
        %1646 = vmatprep.subr.mxu0 0.0
        %1647 = vmatpush1.msra.mxu0 0.0
        %1648 = vmatprep.subr.mxu0 0.0
        %1649 = vmatpush1.msra.mxu0 0.0
        %1650 = vmatprep.subr.mxu0 0.0
        %1651 = vmatpush1.msra.mxu0 0.0
        %1652 = vmatprep.subr.mxu0 0.0
        %1653 = vmatpush1.msra.mxu0 0.0
        %1654 = vmatprep.subr.mxu0 0.0
        %1655 = vmatpush1.msra.mxu0 0.0
        %1656 = vmatprep.subr.mxu0 0.0
        %1657 = vmatpush1.msra.mxu0 0.0
        %1658 = vmatprep.subr.mxu0 0.0
        %1659 = vmatpush1.msra.mxu0 0.0
        %1660 = vmatprep.subr.mxu0 0.0
        %1661 = vmatpush1.msra.mxu0 0.0
        %1662 = vmatprep.subr.mxu0 0.0
        %1663 = vmatpush1.msra.mxu0 0.0
        %1664 = vmatprep.subr.mxu0 0.0
        %1665 = vmatpush1.msra.mxu0 0.0
        %1666 = vmatprep.subr.mxu0 0.0
        %1667 = vmatpush1.msra.mxu0 0.0
        %1668 = vmatprep.mubr.f32.mxu0 0.0
        %1669 = vmatmul.mubr.f32.gmra.mrb[0].mxu0 %v1602
        %v1670 = vpop.f32.mrb[0].mxu0
        %v1671 = vadd.f32 %v1600, %v1670
        %v1672 = vpop.f32.mrb[0].mxu0
        %1673 = vdwg.mxu0
        %1674 = vst [vmem:[%s630] sm:$0x1] %v1671
        %s1675 = sand.u32 %s472, 1
        %s1676 = scalar_lea.sflag [#allocation3], %s1675
        %s1677 = sand.u32 %s472, 1
        %s1678 = scalar_lea.vmem [#allocation2], %s1677
        // Predicated region
        $region108: #{mcc_classifier_forward.1} parent=99 // pred_check
          %p1679 = pneg %p482
        $region109: #{mcc_classifier_forward.1} parent=99 // pred_check_branch
          %1681 = sbr.rel (%p1679) target = $region111
        $region110: #{mcc_classifier_forward.1} parent=99 // pred_region
          %s1683 = ssub.s32 16, 16
          %1684 = vsyncadd %s1676, %s1683
          %s1685 = smul.addr %s34, 16
          %s1686 = scalar_lea.hbm %s20, %s1685
          %s1688 = sshll.u32 %s1678, 4
          %s1689 = int_to_ptr.vmem [resolvable:$true] %s1688
          %1691 = dma.vmem_to_hbm [thread:$0]  %s1689, 16, %s1686, %s1676
        $region111: #{mcc_classifier_forward.1} parent=99 // pred_fallthru
          _
      $region100: #{mcc_classifier_forward.1} parent=5 // pred_fallthru
        _
      %p1692 = scmp.le.s32.totalorder 2, %s29
      // Predicated region
      $region112: #{mcc_classifier_forward.1} parent=5 // pred_check
        %p1693 = pneg %p1692
      $region113: #{mcc_classifier_forward.1} parent=5 // pred_check_branch
        %1695 = sbr.rel (%p1693) target = $region115
      $region114: #{mcc_classifier_forward.1} parent=5 // pred_region
        %s1696 = ssub.s32 %s29, 2
        // Predicated region
        $region116: #{mcc_classifier_forward.1} parent=114 // pred_check
          %p1697 = pneg %p488
        $region117: #{mcc_classifier_forward.1} parent=114 // pred_check_branch
          %1699 = sbr.rel (%p1697) target = $region119
        $region118: #{mcc_classifier_forward.1} parent=114 // pred_region
          %s1700 = sand.u32 %s473, 1
          %s1701 = scalar_lea.sflag [#allocation3], %s1700
          %s1702 = sand.u32 %s473, 1
          %s1703 = scalar_lea.vmem [#allocation2], %s1702
          %1704 = dma.done %s1701, 16
        $region119: #{mcc_classifier_forward.1} parent=114 // pred_fallthru
          _
      $region115: #{mcc_classifier_forward.1} parent=5 // pred_fallthru
        _
    $region6: #{mcc_classifier_forward.1} parent=1 // loop_footer
      %s33 = sadd.s32 1, %s29
    $region7: #{mcc_classifier_forward.1} parent=1 // loop_footer_branch
      %28 = sbr.rel target = $region3
    $region8: #{mcc_classifier_forward.1} parent=1 // loop_exit
      _
    %1705 = vsyncpa [#allocation3], 1
    %s1706 = scalar_lea.sflag [#allocation3], 1
    %1707 = vsyncpa %s1706, 1

</llo_original>
